<compile_context>
chip_gen: v7x
topology: tpu7x:2x2x1
jax: 0.10.0
libtpu: 0.0.40
codegen_flags: <defaults>
</compile_context>

<pallas_src>
from functools import partial

import jax
import jax.numpy as jnp
from jax import lax
from jax.experimental import pallas as pl
from jax.experimental.pallas import tpu as pltpu


def residual_attention_kernel(x_ref, wqkv_ref, wout_ref, o_ref, *,
                              heads, dim_head):
    # x_ref block: (bb, n, dim) f32; weights fully resident in VMEM as bf16.
    bb, n, dim = x_ref.shape
    inner = heads * dim_head

    for bi in range(bb):                              # static unroll over batch rows
        x = x_ref[bi]                                 # (n, dim) f32, kept for residual
        xb = x.astype(jnp.bfloat16)

        # ---- fused Q/K/V projection: one lane-dense 2D matmul -------------
        # (scale for q is already folded into wqkv columns at init)
        qkv = jnp.dot(xb, wqkv_ref[...],
                      preferred_element_type=jnp.float32)   # (n, 3*inner) f32 acc
        qkv = qkv.astype(jnp.bfloat16)

        # Accumulator seeded with x: fuses the residual add and lets the
        # per-head output projections accumulate straight into it.
        acc = x                                        # (n, dim) f32

        for h in range(heads):                         # static unroll over heads
            q = qkv[:, h * dim_head:(h + 1) * dim_head]                       # (n, dh)
            k = qkv[:, inner + h * dim_head:inner + (h + 1) * dim_head]       # (n, dh)
            v = qkv[:, 2 * inner + h * dim_head:2 * inner + (h + 1) * dim_head]

            # scores: contract the dim_head axes directly (q @ k^T)
            dots = lax.dot_general(
                q, k, dimension_numbers=(((1,), (1,)), ((), ())),
                preferred_element_type=jnp.float32)    # (n, n) f32, scale pre-folded

            # numerically-stable softmax (elementwise math stays f32)
            m = jnp.max(dots, axis=-1, keepdims=True)
            p = jnp.exp(dots - m)
            denom = jnp.sum(p, axis=-1, keepdims=True)
            attn = p * pl.reciprocal(denom, approx=True)   # EUP slot, frees VALU

            # attention @ V, then output projection accumulated into acc
            ctx = jnp.dot(attn.astype(jnp.bfloat16), v,
                          preferred_element_type=jnp.float32)      # (n, dh) f32
            acc = acc + jnp.dot(ctx.astype(jnp.bfloat16), wout_ref[h],
                                preferred_element_type=jnp.float32)  # (n, dim) f32

        o_ref[bi] = acc.astype(o_ref.dtype)


def make_residual_attention(w_qkv, w_out, *, heads, dim_head, batch_block=None):
    """Prepare weights ONCE (relayout / scale-fold / bf16 cast) and return a
    jitted forward: x (b, n, dim) -> Attention(x) + x."""
    dim = w_qkv.shape[0]
    inner = heads * dim_head
    assert w_qkv.shape == (dim, 3 * inner)
    assert w_out.shape == (inner, dim)

    # Fold softmax scale into the Q columns (exact: dim_head**-0.5 = 0.25 here).
    scale = dim_head ** -0.5
    col_scale = jnp.concatenate([
        jnp.full((inner,), scale, dtype=w_qkv.dtype),
        jnp.ones((2 * inner,), dtype=w_qkv.dtype),
    ])
    wqkv_r = (w_qkv * col_scale[None, :]).astype(jnp.bfloat16)        # (dim, 3*inner)
    wout_r = w_out.reshape(heads, dim_head, dim).astype(jnp.bfloat16)  # (h, dh, dim)

    kernel = partial(residual_attention_kernel, heads=heads, dim_head=dim_head)

    def fwd(x):
        b, n, d = x.shape
        assert d == dim
        bb = b if batch_block is None else batch_block
        assert b % bb == 0, "batch must be divisible by batch_block"
        num_blocks = pl.cdiv(b, bb)

        flops_per_row = (2 * n * dim * 3 * inner          # qkv projection
                         + 2 * heads * n * n * dim_head   # q @ k^T
                         + 2 * heads * n * n * dim_head   # attn @ v
                         + 2 * n * inner * dim            # output projection
                         + n * dim)                       # residual add
        bytes_accessed = (x.size * x.dtype.itemsize
                          + wqkv_r.size * 2 + wout_r.size * 2
                          + b * n * dim * x.dtype.itemsize)

        # TODO(synk): input_output_aliases={0: 0} would reuse x's HBM buffer for
        # the output when the caller no longer needs x (donation semantics).
        return pl.pallas_call(
            kernel,
            out_shape=jax.ShapeDtypeStruct((b, n, dim), x.dtype),
            grid=(num_blocks,),
            in_specs=[
                pl.BlockSpec((bb, n, dim), lambda i: (i, 0, 0)),
                pl.BlockSpec((dim, 3 * inner), lambda i: (0, 0)),
                pl.BlockSpec((heads, dim_head, dim), lambda i: (0, 0, 0)),
            ],
            out_specs=pl.BlockSpec((bb, n, dim), lambda i: (i, 0, 0)),
            compiler_params=pltpu.CompilerParams(
                dimension_semantics=("parallel",)),
            cost_estimate=pl.CostEstimate(
                flops=b * flops_per_row,
                transcendentals=b * heads * n * n,
                bytes_accessed=bytes_accessed),
        )(x, wqkv_r, wout_r)

    return jax.jit(fwd)


def residual_attention_ref(x, w_qkv, w_out, *, heads, dim_head):
    # Pure-JAX f32 reference matching the PyTorch Residual(Attention) forward.
    b, n, dim = x.shape
    inner = heads * dim_head
    scale = dim_head ** -0.5
    qkv = jnp.einsum("bnd,de->bne", x, w_qkv)
    q, k, v = jnp.split(qkv, 3, axis=-1)

    def to_heads(t):
        return t.reshape(b, n, heads, dim_head).transpose(0, 2, 1, 3)  # (b,h,n,d)

    q, k, v = map(to_heads, (q, k, v))
    dots = jnp.einsum("bhid,bhjd->bhij", q, k) * scale
    attn = jax.nn.softmax(dots, axis=-1)
    out = jnp.einsum("bhij,bhjd->bhid", attn, v)
    out = out.transpose(0, 2, 1, 3).reshape(b, n, inner)
    return jnp.einsum("bne,ed->bnd", out, w_out) + x


if __name__ == "__main__":
    # Small shapes consistent with the module: b=2, n=8 tokens, dim=32, 4 heads x 16.
    b, n, dim = 2, 8, 32
    heads, dim_head = 4, 16
    inner = heads * dim_head

    key = jax.random.PRNGKey(0)
    kx, kq, ko = jax.random.split(key, 3)
    x = jax.random.normal(kx, (b, n, dim), dtype=jnp.float32)
    w_qkv = jax.random.normal(kq, (dim, 3 * inner), dtype=jnp.float32) * 0.05
    w_out = jax.random.normal(ko, (inner, dim), dtype=jnp.float32) * 0.05

    # Pure-JAX reference computed first (would also be required if x were donated).
    ref = residual_attention_ref(x, w_qkv, w_out, heads=heads, dim_head=dim_head)

    fwd = make_residual_attention(w_qkv, w_out, heads=heads, dim_head=dim_head)
    out = jax.block_until_ready(fwd(x))

    assert out.shape == (b, n, dim)
    # bf16 matmul operands + approx EUP reciprocal -> slightly relaxed tolerance.
    assert jnp.allclose(out, ref, atol=2e-2, rtol=2e-2), "mismatch vs reference"

    print("KERNEL_OK")
</pallas_src>

<mosaic_0001>
module attributes {stable_mosaic.version = 11 : i64} {
  func.func @residual_attention_kernel(%arg0: i32, %arg1: memref<2x8x32xf32, #tpu.memory_space<vmem>>, %arg2: memref<32x192xbf16, #tpu.memory_space<vmem>>, %arg3: memref<4x16x32xbf16, #tpu.memory_space<vmem>>, %arg4: memref<2x8x32xf32, #tpu.memory_space<vmem>>) attributes {dimension_semantics = [#tpu.dimension_semantics<parallel>], iteration_bounds = array<i64: 1>, scalar_prefetch = 0 : i64, scratch_operands = 0 : i64, tpu.core_type = #tpu.core_type<tc>, window_params = [{transform_indices = @transform_0, window_bounds = array<i64: 2, 8, 32>}, {pipeline_mode = #tpu.pipeline_mode<synchronous>, transform_indices = @transform_1, window_bounds = array<i64: 32, 192>}, {pipeline_mode = #tpu.pipeline_mode<synchronous>, transform_indices = @transform_2, window_bounds = array<i64: 4, 16, 32>}, {transform_indices = @transform_3, window_bounds = array<i64: 2, 8, 32>}]} {
    %c0 = arith.constant 0 : index
    %c0_0 = arith.constant 0 : index
    %c0_1 = arith.constant 0 : index
    %0 = vector.load %arg1[%c0, %c0_0, %c0_1] : memref<2x8x32xf32, #tpu.memory_space<vmem>>, vector<1x8x32xf32>
    %1 = vector.shape_cast %0 : vector<1x8x32xf32> to vector<8x32xf32>
    %2 = arith.truncf %1 : vector<8x32xf32> to vector<8x32xbf16>
    %c0_2 = arith.constant 0 : index
    %c0_3 = arith.constant 0 : index
    %3 = vector.load %arg2[%c0_2, %c0_3] : memref<32x192xbf16, #tpu.memory_space<vmem>>, vector<32x192xbf16>
    %cst = arith.constant dense<0.000000e+00> : vector<8x192xf32>
    %4 = tpu.matmul %2, %3, %cst {dimension_numbers = #tpu.dot_dimension_numbers<[1], [0], [0], [1], [0, 0, 1, 1], [], []>} : vector<8x32xbf16>, vector<32x192xbf16>, vector<8x192xf32> -> vector<8x192xf32>
    %5 = arith.truncf %4 : vector<8x192xf32> to vector<8x192xbf16>
    %6 = vector.extract_strided_slice %5 {offsets = [0, 0], sizes = [8, 16], strides = [1, 1]} : vector<8x192xbf16> to vector<8x16xbf16>
    %7 = vector.extract_strided_slice %5 {offsets = [0, 64], sizes = [8, 16], strides = [1, 1]} : vector<8x192xbf16> to vector<8x16xbf16>
    %8 = vector.extract_strided_slice %5 {offsets = [0, 128], sizes = [8, 16], strides = [1, 1]} : vector<8x192xbf16> to vector<8x16xbf16>
    %cst_4 = arith.constant dense<0.000000e+00> : vector<8x8xf32>
    %9 = tpu.matmul %6, %7, %cst_4 {dimension_numbers = #tpu.dot_dimension_numbers<[1], [1], [0], [0], [0, 0, 1, 0], [], []>} : vector<8x16xbf16>, vector<8x16xbf16>, vector<8x8xf32> -> vector<8x8xf32>
    %cst_5 = arith.constant dense<0xFF800000> : vector<8xf32>
    %10 = vector.multi_reduction <maximumf>, %9, %cst_5 [1] : vector<8x8xf32> to vector<8xf32>
    %11 = vector.shape_cast %10 : vector<8xf32> to vector<8x1xf32>
    %12 = vector.broadcast %11 : vector<8x1xf32> to vector<8x8xf32>
    %13 = arith.subf %9, %12 : vector<8x8xf32>
    %14 = math.exp %13 : vector<8x8xf32>
    %cst_6 = arith.constant dense<0.000000e+00> : vector<8xf32>
    %15 = vector.multi_reduction <add>, %14, %cst_6 [1] : vector<8x8xf32> to vector<8xf32>
    %16 = vector.shape_cast %15 : vector<8xf32> to vector<8x1xf32>
    %17 = tpu.reciprocal %16 {approx = true} : vector<8x1xf32> -> vector<8x1xf32>
    %18 = vector.broadcast %17 : vector<8x1xf32> to vector<8x8xf32>
    %19 = arith.mulf %14, %18 : vector<8x8xf32>
    %20 = arith.truncf %19 : vector<8x8xf32> to vector<8x8xbf16>
    %cst_7 = arith.constant dense<0.000000e+00> : vector<8x16xf32>
    %21 = tpu.matmul %20, %8, %cst_7 {dimension_numbers = #tpu.dot_dimension_numbers<[1], [0], [0], [1], [0, 0, 1, 1], [], []>} : vector<8x8xbf16>, vector<8x16xbf16>, vector<8x16xf32> -> vector<8x16xf32>
    %22 = arith.truncf %21 : vector<8x16xf32> to vector<8x16xbf16>
    %c0_8 = arith.constant 0 : index
    %c0_9 = arith.constant 0 : index
    %c0_10 = arith.constant 0 : index
    %23 = vector.load %arg3[%c0_8, %c0_9, %c0_10] : memref<4x16x32xbf16, #tpu.memory_space<vmem>>, vector<1x16x32xbf16>
    %24 = vector.shape_cast %23 : vector<1x16x32xbf16> to vector<16x32xbf16>
    %cst_11 = arith.constant dense<0.000000e+00> : vector<8x32xf32>
    %25 = tpu.matmul %22, %24, %cst_11 {dimension_numbers = #tpu.dot_dimension_numbers<[1], [0], [0], [1], [0, 0, 1, 1], [], []>} : vector<8x16xbf16>, vector<16x32xbf16>, vector<8x32xf32> -> vector<8x32xf32>
    %26 = arith.addf %1, %25 : vector<8x32xf32>
    %27 = vector.extract_strided_slice %5 {offsets = [0, 16], sizes = [8, 16], strides = [1, 1]} : vector<8x192xbf16> to vector<8x16xbf16>
    %28 = vector.extract_strided_slice %5 {offsets = [0, 80], sizes = [8, 16], strides = [1, 1]} : vector<8x192xbf16> to vector<8x16xbf16>
    %29 = vector.extract_strided_slice %5 {offsets = [0, 144], sizes = [8, 16], strides = [1, 1]} : vector<8x192xbf16> to vector<8x16xbf16>
    %cst_12 = arith.constant dense<0.000000e+00> : vector<8x8xf32>
    %30 = tpu.matmul %27, %28, %cst_12 {dimension_numbers = #tpu.dot_dimension_numbers<[1], [1], [0], [0], [0, 0, 1, 0], [], []>} : vector<8x16xbf16>, vector<8x16xbf16>, vector<8x8xf32> -> vector<8x8xf32>
    %cst_13 = arith.constant dense<0xFF800000> : vector<8xf32>
    %31 = vector.multi_reduction <maximumf>, %30, %cst_13 [1] : vector<8x8xf32> to vector<8xf32>
    %32 = vector.shape_cast %31 : vector<8xf32> to vector<8x1xf32>
    %33 = vector.broadcast %32 : vector<8x1xf32> to vector<8x8xf32>
    %34 = arith.subf %30, %33 : vector<8x8xf32>
    %35 = math.exp %34 : vector<8x8xf32>
    %cst_14 = arith.constant dense<0.000000e+00> : vector<8xf32>
    %36 = vector.multi_reduction <add>, %35, %cst_14 [1] : vector<8x8xf32> to vector<8xf32>
    %37 = vector.shape_cast %36 : vector<8xf32> to vector<8x1xf32>
    %38 = tpu.reciprocal %37 {approx = true} : vector<8x1xf32> -> vector<8x1xf32>
    %39 = vector.broadcast %38 : vector<8x1xf32> to vector<8x8xf32>
    %40 = arith.mulf %35, %39 : vector<8x8xf32>
    %41 = arith.truncf %40 : vector<8x8xf32> to vector<8x8xbf16>
    %cst_15 = arith.constant dense<0.000000e+00> : vector<8x16xf32>
    %42 = tpu.matmul %41, %29, %cst_15 {dimension_numbers = #tpu.dot_dimension_numbers<[1], [0], [0], [1], [0, 0, 1, 1], [], []>} : vector<8x8xbf16>, vector<8x16xbf16>, vector<8x16xf32> -> vector<8x16xf32>
    %43 = arith.truncf %42 : vector<8x16xf32> to vector<8x16xbf16>
    %c1 = arith.constant 1 : index
    %c0_16 = arith.constant 0 : index
    %c0_17 = arith.constant 0 : index
    %44 = vector.load %arg3[%c1, %c0_16, %c0_17] : memref<4x16x32xbf16, #tpu.memory_space<vmem>>, vector<1x16x32xbf16>
    %45 = vector.shape_cast %44 : vector<1x16x32xbf16> to vector<16x32xbf16>
    %cst_18 = arith.constant dense<0.000000e+00> : vector<8x32xf32>
    %46 = tpu.matmul %43, %45, %cst_18 {dimension_numbers = #tpu.dot_dimension_numbers<[1], [0], [0], [1], [0, 0, 1, 1], [], []>} : vector<8x16xbf16>, vector<16x32xbf16>, vector<8x32xf32> -> vector<8x32xf32>
    %47 = arith.addf %26, %46 : vector<8x32xf32>
    %48 = vector.extract_strided_slice %5 {offsets = [0, 32], sizes = [8, 16], strides = [1, 1]} : vector<8x192xbf16> to vector<8x16xbf16>
    %49 = vector.extract_strided_slice %5 {offsets = [0, 96], sizes = [8, 16], strides = [1, 1]} : vector<8x192xbf16> to vector<8x16xbf16>
    %50 = vector.extract_strided_slice %5 {offsets = [0, 160], sizes = [8, 16], strides = [1, 1]} : vector<8x192xbf16> to vector<8x16xbf16>
    %cst_19 = arith.constant dense<0.000000e+00> : vector<8x8xf32>
    %51 = tpu.matmul %48, %49, %cst_19 {dimension_numbers = #tpu.dot_dimension_numbers<[1], [1], [0], [0], [0, 0, 1, 0], [], []>} : vector<8x16xbf16>, vector<8x16xbf16>, vector<8x8xf32> -> vector<8x8xf32>
    %cst_20 = arith.constant dense<0xFF800000> : vector<8xf32>
    %52 = vector.multi_reduction <maximumf>, %51, %cst_20 [1] : vector<8x8xf32> to vector<8xf32>
    %53 = vector.shape_cast %52 : vector<8xf32> to vector<8x1xf32>
    %54 = vector.broadcast %53 : vector<8x1xf32> to vector<8x8xf32>
    %55 = arith.subf %51, %54 : vector<8x8xf32>
    %56 = math.exp %55 : vector<8x8xf32>
    %cst_21 = arith.constant dense<0.000000e+00> : vector<8xf32>
    %57 = vector.multi_reduction <add>, %56, %cst_21 [1] : vector<8x8xf32> to vector<8xf32>
    %58 = vector.shape_cast %57 : vector<8xf32> to vector<8x1xf32>
    %59 = tpu.reciprocal %58 {approx = true} : vector<8x1xf32> -> vector<8x1xf32>
    %60 = vector.broadcast %59 : vector<8x1xf32> to vector<8x8xf32>
    %61 = arith.mulf %56, %60 : vector<8x8xf32>
    %62 = arith.truncf %61 : vector<8x8xf32> to vector<8x8xbf16>
    %cst_22 = arith.constant dense<0.000000e+00> : vector<8x16xf32>
    %63 = tpu.matmul %62, %50, %cst_22 {dimension_numbers = #tpu.dot_dimension_numbers<[1], [0], [0], [1], [0, 0, 1, 1], [], []>} : vector<8x8xbf16>, vector<8x16xbf16>, vector<8x16xf32> -> vector<8x16xf32>
    %64 = arith.truncf %63 : vector<8x16xf32> to vector<8x16xbf16>
    %c2 = arith.constant 2 : index
    %c0_23 = arith.constant 0 : index
    %c0_24 = arith.constant 0 : index
    %65 = vector.load %arg3[%c2, %c0_23, %c0_24] : memref<4x16x32xbf16, #tpu.memory_space<vmem>>, vector<1x16x32xbf16>
    %66 = vector.shape_cast %65 : vector<1x16x32xbf16> to vector<16x32xbf16>
    %cst_25 = arith.constant dense<0.000000e+00> : vector<8x32xf32>
    %67 = tpu.matmul %64, %66, %cst_25 {dimension_numbers = #tpu.dot_dimension_numbers<[1], [0], [0], [1], [0, 0, 1, 1], [], []>} : vector<8x16xbf16>, vector<16x32xbf16>, vector<8x32xf32> -> vector<8x32xf32>
    %68 = arith.addf %47, %67 : vector<8x32xf32>
    %69 = vector.extract_strided_slice %5 {offsets = [0, 48], sizes = [8, 16], strides = [1, 1]} : vector<8x192xbf16> to vector<8x16xbf16>
    %70 = vector.extract_strided_slice %5 {offsets = [0, 112], sizes = [8, 16], strides = [1, 1]} : vector<8x192xbf16> to vector<8x16xbf16>
    %71 = vector.extract_strided_slice %5 {offsets = [0, 176], sizes = [8, 16], strides = [1, 1]} : vector<8x192xbf16> to vector<8x16xbf16>
    %cst_26 = arith.constant dense<0.000000e+00> : vector<8x8xf32>
    %72 = tpu.matmul %69, %70, %cst_26 {dimension_numbers = #tpu.dot_dimension_numbers<[1], [1], [0], [0], [0, 0, 1, 0], [], []>} : vector<8x16xbf16>, vector<8x16xbf16>, vector<8x8xf32> -> vector<8x8xf32>
    %cst_27 = arith.constant dense<0xFF800000> : vector<8xf32>
    %73 = vector.multi_reduction <maximumf>, %72, %cst_27 [1] : vector<8x8xf32> to vector<8xf32>
    %74 = vector.shape_cast %73 : vector<8xf32> to vector<8x1xf32>
    %75 = vector.broadcast %74 : vector<8x1xf32> to vector<8x8xf32>
    %76 = arith.subf %72, %75 : vector<8x8xf32>
    %77 = math.exp %76 : vector<8x8xf32>
    %cst_28 = arith.constant dense<0.000000e+00> : vector<8xf32>
    %78 = vector.multi_reduction <add>, %77, %cst_28 [1] : vector<8x8xf32> to vector<8xf32>
    %79 = vector.shape_cast %78 : vector<8xf32> to vector<8x1xf32>
    %80 = tpu.reciprocal %79 {approx = true} : vector<8x1xf32> -> vector<8x1xf32>
    %81 = vector.broadcast %80 : vector<8x1xf32> to vector<8x8xf32>
    %82 = arith.mulf %77, %81 : vector<8x8xf32>
    %83 = arith.truncf %82 : vector<8x8xf32> to vector<8x8xbf16>
    %cst_29 = arith.constant dense<0.000000e+00> : vector<8x16xf32>
    %84 = tpu.matmul %83, %71, %cst_29 {dimension_numbers = #tpu.dot_dimension_numbers<[1], [0], [0], [1], [0, 0, 1, 1], [], []>} : vector<8x8xbf16>, vector<8x16xbf16>, vector<8x16xf32> -> vector<8x16xf32>
    %85 = arith.truncf %84 : vector<8x16xf32> to vector<8x16xbf16>
    %c3 = arith.constant 3 : index
    %c0_30 = arith.constant 0 : index
    %c0_31 = arith.constant 0 : index
    %86 = vector.load %arg3[%c3, %c0_30, %c0_31] : memref<4x16x32xbf16, #tpu.memory_space<vmem>>, vector<1x16x32xbf16>
    %87 = vector.shape_cast %86 : vector<1x16x32xbf16> to vector<16x32xbf16>
    %cst_32 = arith.constant dense<0.000000e+00> : vector<8x32xf32>
    %88 = tpu.matmul %85, %87, %cst_32 {dimension_numbers = #tpu.dot_dimension_numbers<[1], [0], [0], [1], [0, 0, 1, 1], [], []>} : vector<8x16xbf16>, vector<16x32xbf16>, vector<8x32xf32> -> vector<8x32xf32>
    %89 = arith.addf %68, %88 : vector<8x32xf32>
    %c0_33 = arith.constant 0 : index
    %c0_34 = arith.constant 0 : index
    %c0_35 = arith.constant 0 : index
    %90 = vector.load %arg4[%c0_33, %c0_34, %c0_35] : memref<2x8x32xf32, #tpu.memory_space<vmem>>, vector<1x8x32xf32>
    %91 = vector.shape_cast %90 : vector<1x8x32xf32> to vector<8x32xf32>
    %92 = vector.shape_cast %89 : vector<8x32xf32> to vector<1x8x32xf32>
    tpu.vector_store %arg4[%c0_33, %c0_34, %c0_35], %92 {strides = array<i32>} : memref<2x8x32xf32, #tpu.memory_space<vmem>>, vector<1x8x32xf32>,
    %c1_36 = arith.constant 1 : index
    %c0_37 = arith.constant 0 : index
    %c0_38 = arith.constant 0 : index
    %93 = vector.load %arg1[%c1_36, %c0_37, %c0_38] : memref<2x8x32xf32, #tpu.memory_space<vmem>>, vector<1x8x32xf32>
    %94 = vector.shape_cast %93 : vector<1x8x32xf32> to vector<8x32xf32>
    %95 = arith.truncf %94 : vector<8x32xf32> to vector<8x32xbf16>
    %c0_39 = arith.constant 0 : index
    %c0_40 = arith.constant 0 : index
    %96 = vector.load %arg2[%c0_39, %c0_40] : memref<32x192xbf16, #tpu.memory_space<vmem>>, vector<32x192xbf16>
    %cst_41 = arith.constant dense<0.000000e+00> : vector<8x192xf32>
    %97 = tpu.matmul %95, %96, %cst_41 {dimension_numbers = #tpu.dot_dimension_numbers<[1], [0], [0], [1], [0, 0, 1, 1], [], []>} : vector<8x32xbf16>, vector<32x192xbf16>, vector<8x192xf32> -> vector<8x192xf32>
    %98 = arith.truncf %97 : vector<8x192xf32> to vector<8x192xbf16>
    %99 = vector.extract_strided_slice %98 {offsets = [0, 0], sizes = [8, 16], strides = [1, 1]} : vector<8x192xbf16> to vector<8x16xbf16>
    %100 = vector.extract_strided_slice %98 {offsets = [0, 64], sizes = [8, 16], strides = [1, 1]} : vector<8x192xbf16> to vector<8x16xbf16>
    %101 = vector.extract_strided_slice %98 {offsets = [0, 128], sizes = [8, 16], strides = [1, 1]} : vector<8x192xbf16> to vector<8x16xbf16>
    %cst_42 = arith.constant dense<0.000000e+00> : vector<8x8xf32>
    %102 = tpu.matmul %99, %100, %cst_42 {dimension_numbers = #tpu.dot_dimension_numbers<[1], [1], [0], [0], [0, 0, 1, 0], [], []>} : vector<8x16xbf16>, vector<8x16xbf16>, vector<8x8xf32> -> vector<8x8xf32>
    %cst_43 = arith.constant dense<0xFF800000> : vector<8xf32>
    %103 = vector.multi_reduction <maximumf>, %102, %cst_43 [1] : vector<8x8xf32> to vector<8xf32>
    %104 = vector.shape_cast %103 : vector<8xf32> to vector<8x1xf32>
    %105 = vector.broadcast %104 : vector<8x1xf32> to vector<8x8xf32>
    %106 = arith.subf %102, %105 : vector<8x8xf32>
    %107 = math.exp %106 : vector<8x8xf32>
    %cst_44 = arith.constant dense<0.000000e+00> : vector<8xf32>
    %108 = vector.multi_reduction <add>, %107, %cst_44 [1] : vector<8x8xf32> to vector<8xf32>
    %109 = vector.shape_cast %108 : vector<8xf32> to vector<8x1xf32>
    %110 = tpu.reciprocal %109 {approx = true} : vector<8x1xf32> -> vector<8x1xf32>
    %111 = vector.broadcast %110 : vector<8x1xf32> to vector<8x8xf32>
    %112 = arith.mulf %107, %111 : vector<8x8xf32>
    %113 = arith.truncf %112 : vector<8x8xf32> to vector<8x8xbf16>
    %cst_45 = arith.constant dense<0.000000e+00> : vector<8x16xf32>
    %114 = tpu.matmul %113, %101, %cst_45 {dimension_numbers = #tpu.dot_dimension_numbers<[1], [0], [0], [1], [0, 0, 1, 1], [], []>} : vector<8x8xbf16>, vector<8x16xbf16>, vector<8x16xf32> -> vector<8x16xf32>
    %115 = arith.truncf %114 : vector<8x16xf32> to vector<8x16xbf16>
    %c0_46 = arith.constant 0 : index
    %c0_47 = arith.constant 0 : index
    %c0_48 = arith.constant 0 : index
    %116 = vector.load %arg3[%c0_46, %c0_47, %c0_48] : memref<4x16x32xbf16, #tpu.memory_space<vmem>>, vector<1x16x32xbf16>
    %117 = vector.shape_cast %116 : vector<1x16x32xbf16> to vector<16x32xbf16>
    %cst_49 = arith.constant dense<0.000000e+00> : vector<8x32xf32>
    %118 = tpu.matmul %115, %117, %cst_49 {dimension_numbers = #tpu.dot_dimension_numbers<[1], [0], [0], [1], [0, 0, 1, 1], [], []>} : vector<8x16xbf16>, vector<16x32xbf16>, vector<8x32xf32> -> vector<8x32xf32>
    %119 = arith.addf %94, %118 : vector<8x32xf32>
    %120 = vector.extract_strided_slice %98 {offsets = [0, 16], sizes = [8, 16], strides = [1, 1]} : vector<8x192xbf16> to vector<8x16xbf16>
    %121 = vector.extract_strided_slice %98 {offsets = [0, 80], sizes = [8, 16], strides = [1, 1]} : vector<8x192xbf16> to vector<8x16xbf16>
    %122 = vector.extract_strided_slice %98 {offsets = [0, 144], sizes = [8, 16], strides = [1, 1]} : vector<8x192xbf16> to vector<8x16xbf16>
    %cst_50 = arith.constant dense<0.000000e+00> : vector<8x8xf32>
    %123 = tpu.matmul %120, %121, %cst_50 {dimension_numbers = #tpu.dot_dimension_numbers<[1], [1], [0], [0], [0, 0, 1, 0], [], []>} : vector<8x16xbf16>, vector<8x16xbf16>, vector<8x8xf32> -> vector<8x8xf32>
    %cst_51 = arith.constant dense<0xFF800000> : vector<8xf32>
    %124 = vector.multi_reduction <maximumf>, %123, %cst_51 [1] : vector<8x8xf32> to vector<8xf32>
    %125 = vector.shape_cast %124 : vector<8xf32> to vector<8x1xf32>
    %126 = vector.broadcast %125 : vector<8x1xf32> to vector<8x8xf32>
    %127 = arith.subf %123, %126 : vector<8x8xf32>
    %128 = math.exp %127 : vector<8x8xf32>
    %cst_52 = arith.constant dense<0.000000e+00> : vector<8xf32>
    %129 = vector.multi_reduction <add>, %128, %cst_52 [1] : vector<8x8xf32> to vector<8xf32>
    %130 = vector.shape_cast %129 : vector<8xf32> to vector<8x1xf32>
    %131 = tpu.reciprocal %130 {approx = true} : vector<8x1xf32> -> vector<8x1xf32>
    %132 = vector.broadcast %131 : vector<8x1xf32> to vector<8x8xf32>
    %133 = arith.mulf %128, %132 : vector<8x8xf32>
    %134 = arith.truncf %133 : vector<8x8xf32> to vector<8x8xbf16>
    %cst_53 = arith.constant dense<0.000000e+00> : vector<8x16xf32>
    %135 = tpu.matmul %134, %122, %cst_53 {dimension_numbers = #tpu.dot_dimension_numbers<[1], [0], [0], [1], [0, 0, 1, 1], [], []>} : vector<8x8xbf16>, vector<8x16xbf16>, vector<8x16xf32> -> vector<8x16xf32>
    %136 = arith.truncf %135 : vector<8x16xf32> to vector<8x16xbf16>
    %c1_54 = arith.constant 1 : index
    %c0_55 = arith.constant 0 : index
    %c0_56 = arith.constant 0 : index
    %137 = vector.load %arg3[%c1_54, %c0_55, %c0_56] : memref<4x16x32xbf16, #tpu.memory_space<vmem>>, vector<1x16x32xbf16>
    %138 = vector.shape_cast %137 : vector<1x16x32xbf16> to vector<16x32xbf16>
    %cst_57 = arith.constant dense<0.000000e+00> : vector<8x32xf32>
    %139 = tpu.matmul %136, %138, %cst_57 {dimension_numbers = #tpu.dot_dimension_numbers<[1], [0], [0], [1], [0, 0, 1, 1], [], []>} : vector<8x16xbf16>, vector<16x32xbf16>, vector<8x32xf32> -> vector<8x32xf32>
    %140 = arith.addf %119, %139 : vector<8x32xf32>
    %141 = vector.extract_strided_slice %98 {offsets = [0, 32], sizes = [8, 16], strides = [1, 1]} : vector<8x192xbf16> to vector<8x16xbf16>
    %142 = vector.extract_strided_slice %98 {offsets = [0, 96], sizes = [8, 16], strides = [1, 1]} : vector<8x192xbf16> to vector<8x16xbf16>
    %143 = vector.extract_strided_slice %98 {offsets = [0, 160], sizes = [8, 16], strides = [1, 1]} : vector<8x192xbf16> to vector<8x16xbf16>
    %cst_58 = arith.constant dense<0.000000e+00> : vector<8x8xf32>
    %144 = tpu.matmul %141, %142, %cst_58 {dimension_numbers = #tpu.dot_dimension_numbers<[1], [1], [0], [0], [0, 0, 1, 0], [], []>} : vector<8x16xbf16>, vector<8x16xbf16>, vector<8x8xf32> -> vector<8x8xf32>
    %cst_59 = arith.constant dense<0xFF800000> : vector<8xf32>
    %145 = vector.multi_reduction <maximumf>, %144, %cst_59 [1] : vector<8x8xf32> to vector<8xf32>
    %146 = vector.shape_cast %145 : vector<8xf32> to vector<8x1xf32>
    %147 = vector.broadcast %146 : vector<8x1xf32> to vector<8x8xf32>
    %148 = arith.subf %144, %147 : vector<8x8xf32>
    %149 = math.exp %148 : vector<8x8xf32>
    %cst_60 = arith.constant dense<0.000000e+00> : vector<8xf32>
    %150 = vector.multi_reduction <add>, %149, %cst_60 [1] : vector<8x8xf32> to vector<8xf32>
    %151 = vector.shape_cast %150 : vector<8xf32> to vector<8x1xf32>
    %152 = tpu.reciprocal %151 {approx = true} : vector<8x1xf32> -> vector<8x1xf32>
    %153 = vector.broadcast %152 : vector<8x1xf32> to vector<8x8xf32>
    %154 = arith.mulf %149, %153 : vector<8x8xf32>
    %155 = arith.truncf %154 : vector<8x8xf32> to vector<8x8xbf16>
    %cst_61 = arith.constant dense<0.000000e+00> : vector<8x16xf32>
    %156 = tpu.matmul %155, %143, %cst_61 {dimension_numbers = #tpu.dot_dimension_numbers<[1], [0], [0], [1], [0, 0, 1, 1], [], []>} : vector<8x8xbf16>, vector<8x16xbf16>, vector<8x16xf32> -> vector<8x16xf32>
    %157 = arith.truncf %156 : vector<8x16xf32> to vector<8x16xbf16>
    %c2_62 = arith.constant 2 : index
    %c0_63 = arith.constant 0 : index
    %c0_64 = arith.constant 0 : index
    %158 = vector.load %arg3[%c2_62, %c0_63, %c0_64] : memref<4x16x32xbf16, #tpu.memory_space<vmem>>, vector<1x16x32xbf16>
    %159 = vector.shape_cast %158 : vector<1x16x32xbf16> to vector<16x32xbf16>
    %cst_65 = arith.constant dense<0.000000e+00> : vector<8x32xf32>
    %160 = tpu.matmul %157, %159, %cst_65 {dimension_numbers = #tpu.dot_dimension_numbers<[1], [0], [0], [1], [0, 0, 1, 1], [], []>} : vector<8x16xbf16>, vector<16x32xbf16>, vector<8x32xf32> -> vector<8x32xf32>
    %161 = arith.addf %140, %160 : vector<8x32xf32>
    %162 = vector.extract_strided_slice %98 {offsets = [0, 48], sizes = [8, 16], strides = [1, 1]} : vector<8x192xbf16> to vector<8x16xbf16>
    %163 = vector.extract_strided_slice %98 {offsets = [0, 112], sizes = [8, 16], strides = [1, 1]} : vector<8x192xbf16> to vector<8x16xbf16>
    %164 = vector.extract_strided_slice %98 {offsets = [0, 176], sizes = [8, 16], strides = [1, 1]} : vector<8x192xbf16> to vector<8x16xbf16>
    %cst_66 = arith.constant dense<0.000000e+00> : vector<8x8xf32>
    %165 = tpu.matmul %162, %163, %cst_66 {dimension_numbers = #tpu.dot_dimension_numbers<[1], [1], [0], [0], [0, 0, 1, 0], [], []>} : vector<8x16xbf16>, vector<8x16xbf16>, vector<8x8xf32> -> vector<8x8xf32>
    %cst_67 = arith.constant dense<0xFF800000> : vector<8xf32>
    %166 = vector.multi_reduction <maximumf>, %165, %cst_67 [1] : vector<8x8xf32> to vector<8xf32>
    %167 = vector.shape_cast %166 : vector<8xf32> to vector<8x1xf32>
    %168 = vector.broadcast %167 : vector<8x1xf32> to vector<8x8xf32>
    %169 = arith.subf %165, %168 : vector<8x8xf32>
    %170 = math.exp %169 : vector<8x8xf32>
    %cst_68 = arith.constant dense<0.000000e+00> : vector<8xf32>
    %171 = vector.multi_reduction <add>, %170, %cst_68 [1] : vector<8x8xf32> to vector<8xf32>
    %172 = vector.shape_cast %171 : vector<8xf32> to vector<8x1xf32>
    %173 = tpu.reciprocal %172 {approx = true} : vector<8x1xf32> -> vector<8x1xf32>
    %174 = vector.broadcast %173 : vector<8x1xf32> to vector<8x8xf32>
    %175 = arith.mulf %170, %174 : vector<8x8xf32>
    %176 = arith.truncf %175 : vector<8x8xf32> to vector<8x8xbf16>
    %cst_69 = arith.constant dense<0.000000e+00> : vector<8x16xf32>
    %177 = tpu.matmul %176, %164, %cst_69 {dimension_numbers = #tpu.dot_dimension_numbers<[1], [0], [0], [1], [0, 0, 1, 1], [], []>} : vector<8x8xbf16>, vector<8x16xbf16>, vector<8x16xf32> -> vector<8x16xf32>
    %178 = arith.truncf %177 : vector<8x16xf32> to vector<8x16xbf16>
    %c3_70 = arith.constant 3 : index
    %c0_71 = arith.constant 0 : index
    %c0_72 = arith.constant 0 : index
    %179 = vector.load %arg3[%c3_70, %c0_71, %c0_72] : memref<4x16x32xbf16, #tpu.memory_space<vmem>>, vector<1x16x32xbf16>
    %180 = vector.shape_cast %179 : vector<1x16x32xbf16> to vector<16x32xbf16>
    %cst_73 = arith.constant dense<0.000000e+00> : vector<8x32xf32>
    %181 = tpu.matmul %178, %180, %cst_73 {dimension_numbers = #tpu.dot_dimension_numbers<[1], [0], [0], [1], [0, 0, 1, 1], [], []>} : vector<8x16xbf16>, vector<16x32xbf16>, vector<8x32xf32> -> vector<8x32xf32>
    %182 = arith.addf %161, %181 : vector<8x32xf32>
    %c1_74 = arith.constant 1 : index
    %c0_75 = arith.constant 0 : index
    %c0_76 = arith.constant 0 : index
    %183 = vector.load %arg4[%c1_74, %c0_75, %c0_76] : memref<2x8x32xf32, #tpu.memory_space<vmem>>, vector<1x8x32xf32>
    %184 = vector.shape_cast %183 : vector<1x8x32xf32> to vector<8x32xf32>
    %185 = vector.shape_cast %182 : vector<8x32xf32> to vector<1x8x32xf32>
    tpu.vector_store %arg4[%c1_74, %c0_75, %c0_76], %185 {strides = array<i32>} : memref<2x8x32xf32, #tpu.memory_space<vmem>>, vector<1x8x32xf32>,
    return
  }
  func.func @transform_0(%arg0: i32) -> (i32, i32, i32) {
    %c0_i32 = arith.constant 0 : i32
    %c0_i32_0 = arith.constant 0 : i32
    %c0_i32_1 = arith.constant 0 : i32
    return %arg0, %c0_i32, %c0_i32_0 : i32, i32, i32
  }
  func.func @transform_1(%arg0: i32) -> (i32, i32) {
    %c0_i32 = arith.constant 0 : i32
    %c0_i32_0 = arith.constant 0 : i32
    %c0_i32_1 = arith.constant 0 : i32
    return %c0_i32, %c0_i32_0 : i32, i32
  }
  func.func @transform_2(%arg0: i32) -> (i32, i32, i32) {
    %c0_i32 = arith.constant 0 : i32
    %c0_i32_0 = arith.constant 0 : i32
    %c0_i32_1 = arith.constant 0 : i32
    %c0_i32_2 = arith.constant 0 : i32
    return %c0_i32, %c0_i32_0, %c0_i32_1 : i32, i32, i32
  }
  func.func @transform_3(%arg0: i32) -> (i32, i32, i32) {
    %c0_i32 = arith.constant 0 : i32
    %c0_i32_0 = arith.constant 0 : i32
    %c0_i32_1 = arith.constant 0 : i32
    return %arg0, %c0_i32, %c0_i32_0 : i32, i32, i32
  }
}

</mosaic_0001>

<llo_original>
// kernel: fwd.1
$region0: #{fwd.1}
  #allocation0 [shape = 'u32[]', space=smem, size = 0x4, offset = 0x4, fixed_abs, tag = 'smem constant byte address 0x4 - core index']
  #allocation1 [shape = 'u32[144,128]{1,0:T(1,128)}', space=vmem, size = 0x12000, scoped, tag = 'internal scratch']
  %s0 = inlined_call_operand.vmem [shape: f32[2,8,32], index: 0, kind: input, shape index: {}]
  %s1 = inlined_call_operand.vmem [shape: bf16[32,192], index: 1, kind: input, shape index: {}]
  %s2 = inlined_call_operand.vmem [shape: bf16[4,16,32], index: 2, kind: input, shape index: {}]
  %s3 = inlined_call_operand.hbm [shape: f32[2,8,32], index: 3, kind: output, shape index: {}]
  %s4 = sld [smem:[#allocation0]]
  $region22: #{fwd.1} parent=0
    _
  %s6 = ssub.s32 1, %s4
  %s7 = scalar_select 0, %s6, %s4
  $region1: #{fwd.1} parent=0
    #allocation2 [shape = 'u8[8192]{0}', space=vmem, size = 0x2000, scoped, tag = 'output window, operand 0, single buffered']
    #allocation3 [shape = 's32[1]{0}', space=sflag, size = 0x4, scoped, tag = 'scoped memory for fwd.1']
    %8 = vsyncpa [#allocation3], 0
    // Predicated region
    $region2: #{fwd.1} parent=1 // pred_check
      _
    $region3: #{fwd.1} parent=1 // pred_check_branch
      %10 = sbr.rel (0) target = $region5
    $region4: #{fwd.1} parent=1 // pred_region
      _
    $region5: #{fwd.1} parent=1 // pred_fallthru
      _
    // Predicated region
    $region6: #{fwd.1} parent=1 // pred_check
      _
    $region7: #{fwd.1} parent=1 // pred_check_branch
      %12 = sbr.rel (0) target = $region9
    $region8: #{fwd.1} parent=1 // pred_region
      _
    $region9: #{fwd.1} parent=1 // pred_fallthru
      _
    // Predicated region
    $region10: #{fwd.1} parent=1 // pred_check
      _
    $region11: #{fwd.1} parent=1 // pred_check_branch
      %14 = sbr.rel (0) target = $region13
    $region12: #{fwd.1} parent=1 // pred_region
      _
    $region13: #{fwd.1} parent=1 // pred_fallthru
      _
    %v16 = vld [vmem:[%s0] sm:$0xff]
    %v17 = vpack.c.bf16 %v16, %v16
    %v18 = vld [vmem:[%s1] sm:$0xff]
    %v19 = vld [vmem:[%s1 + $0x8] sm:$0xff]
    %v20 = vld [vmem:[%s1 + $0x10] sm:$0xff]
    %v21 = vld [vmem:[%s1 + $0x18] sm:$0xff]
    %v26 = vunpack.c.l.b16 %v18
    %v27 = vunpack.c.h.b16 %v18
    %v28 = vunpack.c.l.b16 %v19
    %v29 = vunpack.c.h.b16 %v19
    %v30 = vunpack.c.l.b16 %v20
    %v31 = vunpack.c.h.b16 %v20
    %v32 = vunpack.c.l.b16 %v21
    %v33 = vunpack.c.h.b16 %v21
    %v34 = vpack.c.b16 %v28, %v26
    %v35 = vpack.c.b16 %v29, %v27
    %v36 = vpack.c.b16 %v32, %v30
    %v37 = vpack.c.b16 %v33, %v31
    %vm42 = vcmask 261120
    %v44 = vsel %vm42, %v17, 0
    %46 = vmatprep.subr.bf16.mxu0 %v35
    %47 = vmatpush1.bf16.msra.mxu0 %v34
    %48 = vmatprep.subr.bf16.mxu0 %v37
    %49 = vmatpush1.bf16.msra.mxu0 %v36
    %50 = vmatprep.subr.bf16.mxu0 0
    %51 = vmatpush1.bf16.msra.mxu0 0
    %52 = vmatprep.subr.bf16.mxu0 0
    %53 = vmatpush1.bf16.msra.mxu0 0
    %54 = vmatprep.subr.bf16.mxu0 0
    %55 = vmatpush1.bf16.msra.mxu0 0
    %56 = vmatprep.subr.bf16.mxu0 0
    %57 = vmatpush1.bf16.msra.mxu0 0
    %58 = vmatprep.subr.bf16.mxu0 0
    %59 = vmatpush1.bf16.msra.mxu0 0
    %60 = vmatprep.subr.bf16.mxu0 0
    %61 = vmatpush1.bf16.msra.mxu0 0
    %62 = vmatprep.subr.bf16.mxu0 0
    %63 = vmatpush1.bf16.msra.mxu0 0
    %64 = vmatprep.subr.bf16.mxu0 0
    %65 = vmatpush1.bf16.msra.mxu0 0
    %66 = vmatprep.subr.bf16.mxu0 0
    %67 = vmatpush1.bf16.msra.mxu0 0
    %68 = vmatprep.subr.bf16.mxu0 0
    %69 = vmatpush1.bf16.msra.mxu0 0
    %70 = vmatprep.subr.bf16.mxu0 0
    %71 = vmatpush1.bf16.msra.mxu0 0
    %72 = vmatprep.subr.bf16.mxu0 0
    %73 = vmatpush1.bf16.msra.mxu0 0
    %74 = vmatprep.subr.bf16.mxu0 0
    %75 = vmatpush1.bf16.msra.mxu0 0
    %76 = vmatprep.subr.bf16.mxu0 0
    %77 = vmatpush1.bf16.msra.mxu0 0
    %78 = vmatprep.mubr.bf16.mxu0 0
    %79 = vmatmul.mubr.bf16.gmra.mrb[0].mxu0 %v44
    %v80 = vpop.f32.mrb[0].mxu0
    %v81 = vadd.f32 0.0, %v80
    %v82 = vpop.f32.mrb[0].mxu0
    %v83 = vadd.f32 0.0, %v82
    %v84 = vpop.f32.mrb[0].mxu0
    %v85 = vpop.f32.mrb[0].mxu0
    %86 = vdwg.mxu0
    %v87 = vpack.c.bf16 %v81, %v81
    %v88 = vpack.c.bf16 %v83, %v83
    %90 = vrot.lane.b32.xlu0 %v87, 64
    %v91 = vpop.permute.xlu0 %90
    %vm92 = vcmask 130048
    %v94 = vsel %vm92, %v87, 0
    %v97 = vsel %vm92, %v91, 0
    %99 = vmatprep.subr.bf16.mxu0 0
    %100 = vmatpush1.bf16.xpose.msra.mxu0 %v97
    %101 = vmatprep.subr.bf16.mxu0 0
    %102 = vmatpush1.bf16.xpose.msra.mxu0 0
    %103 = vmatprep.subr.bf16.mxu0 0
    %104 = vmatpush1.bf16.xpose.msra.mxu0 0
    %105 = vmatprep.subr.bf16.mxu0 0
    %106 = vmatpush1.bf16.xpose.msra.mxu0 0
    %107 = vmatprep.subr.bf16.mxu0 0
    %108 = vmatpush1.bf16.xpose.msra.mxu0 0
    %109 = vmatprep.subr.bf16.mxu0 0
    %110 = vmatpush1.bf16.xpose.msra.mxu0 0
    %111 = vmatprep.subr.bf16.mxu0 0
    %112 = vmatpush1.bf16.xpose.msra.mxu0 0
    %113 = vmatprep.subr.bf16.mxu0 0
    %114 = vmatpush1.bf16.xpose.msra.mxu0 0
    %115 = vmatprep.subr.bf16.mxu0 0
    %116 = vmatpush1.bf16.xpose.msra.mxu0 0
    %117 = vmatprep.subr.bf16.mxu0 0
    %118 = vmatpush1.bf16.xpose.msra.mxu0 0
    %119 = vmatprep.subr.bf16.mxu0 0
    %120 = vmatpush1.bf16.xpose.msra.mxu0 0
    %121 = vmatprep.subr.bf16.mxu0 0
    %122 = vmatpush1.bf16.xpose.msra.mxu0 0
    %123 = vmatprep.subr.bf16.mxu0 0
    %124 = vmatpush1.bf16.xpose.msra.mxu0 0
    %125 = vmatprep.subr.bf16.mxu0 0
    %126 = vmatpush1.bf16.xpose.msra.mxu0 0
    %127 = vmatprep.subr.bf16.mxu0 0
    %128 = vmatpush1.bf16.xpose.msra.mxu0 0
    %129 = vmatprep.subr.bf16.mxu0 0
    %130 = vmatpush1.bf16.xpose.msra.mxu0 0
    %131 = vmatprep.mubr.bf16.mxu0 0
    %132 = vmatmul.mubr.bf16.gmra.mrb[0].mxu0 %v94
    %v133 = vpop.f32.mrb[0].mxu0
    %v134 = vadd.f32 0.0, %v133
    %v135 = vpop.f32.mrb[0].mxu0
    %v136 = vpop.f32.mrb[0].mxu0
    %v137 = vpop.f32.mrb[0].mxu0
    %138 = vdwg.mxu0
    %vm139 = vcmask 64512
    %v140 = vsel %vm139, %v134, -inf
    %141 = vmax.xlane.f32.xlu0 %v140
    %v142 = vpop.xlane.xlu0 %141
    %v143 = vsub.f32 %v134, %v142
    %v144 = vmul.f32 %v143, 1.442695
    %v145 = vpow.pop %v144
    %v146 = vsel %vm139, %v145, 0.0
    %147 = vadd.xlane.f32.xlu0 %v146
    %v148 = vpop.xlane.xlu0 %147
    %v149 = vrcp.pop %v148
    %v150 = vmul.f32 %v145, %v149
    %v151 = vpack.c.bf16 %v150, %v150
    %v153 = vsel %vm139, %v151, 0
    %vm155 = vcmask 1043456
    %v157 = vsel %vm155, %v88, 0
    %159 = vmatprep.subr.bf16.mxu0 0
    %160 = vmatpush1.bf16.msra.mxu0 %v157
    %161 = vmatprep.subr.bf16.mxu0 0
    %162 = vmatpush1.bf16.msra.mxu0 0
    %163 = vmatprep.subr.bf16.mxu0 0
    %164 = vmatpush1.bf16.msra.mxu0 0
    %165 = vmatprep.subr.bf16.mxu0 0
    %166 = vmatpush1.bf16.msra.mxu0 0
    %167 = vmatprep.subr.bf16.mxu0 0
    %168 = vmatpush1.bf16.msra.mxu0 0
    %169 = vmatprep.subr.bf16.mxu0 0
    %170 = vmatpush1.bf16.msra.mxu0 0
    %171 = vmatprep.subr.bf16.mxu0 0
    %172 = vmatpush1.bf16.msra.mxu0 0
    %173 = vmatprep.subr.bf16.mxu0 0
    %174 = vmatpush1.bf16.msra.mxu0 0
    %175 = vmatprep.subr.bf16.mxu0 0
    %176 = vmatpush1.bf16.msra.mxu0 0
    %177 = vmatprep.subr.bf16.mxu0 0
    %178 = vmatpush1.bf16.msra.mxu0 0
    %179 = vmatprep.subr.bf16.mxu0 0
    %180 = vmatpush1.bf16.msra.mxu0 0
    %181 = vmatprep.subr.bf16.mxu0 0
    %182 = vmatpush1.bf16.msra.mxu0 0
    %183 = vmatprep.subr.bf16.mxu0 0
    %184 = vmatpush1.bf16.msra.mxu0 0
    %185 = vmatprep.subr.bf16.mxu0 0
    %186 = vmatpush1.bf16.msra.mxu0 0
    %187 = vmatprep.subr.bf16.mxu0 0
    %188 = vmatpush1.bf16.msra.mxu0 0
    %189 = vmatprep.subr.bf16.mxu0 0
    %190 = vmatpush1.bf16.msra.mxu0 0
    %191 = vmatprep.mubr.bf16.mxu0 0
    %192 = vmatmul.mubr.bf16.gmra.mrb[0].mxu0 %v153
    %v193 = vpop.f32.mrb[0].mxu0
    %v194 = vadd.f32 0.0, %v193
    %v195 = vpop.f32.mrb[0].mxu0
    %v196 = vpop.f32.mrb[0].mxu0
    %v197 = vpop.f32.mrb[0].mxu0
    %198 = vdwg.mxu0
    %v199 = vpack.c.bf16 %v194, %v194
    %v200 = vld [vmem:[%s2] sm:$0xf]
    %v201 = vld [vmem:[%s2 + $0x4] sm:$0xf]
    %v204 = vunpack.c.l.b16 %v200
    %v205 = vunpack.c.l.b16 %v201
    %v206 = vpack.c.b16 %v205, %v204
    %v209 = vsel %vm92, %v199, 0
    %211 = vmatprep.subr.bf16.mxu0 0
    %212 = vmatpush1.bf16.msra.mxu0 %v206
    %213 = vmatprep.subr.bf16.mxu0 0
    %214 = vmatpush1.bf16.msra.mxu0 0
    %215 = vmatprep.subr.bf16.mxu0 0
    %216 = vmatpush1.bf16.msra.mxu0 0
    %217 = vmatprep.subr.bf16.mxu0 0
    %218 = vmatpush1.bf16.msra.mxu0 0
    %219 = vmatprep.subr.bf16.mxu0 0
    %220 = vmatpush1.bf16.msra.mxu0 0
    %221 = vmatprep.subr.bf16.mxu0 0
    %222 = vmatpush1.bf16.msra.mxu0 0
    %223 = vmatprep.subr.bf16.mxu0 0
    %224 = vmatpush1.bf16.msra.mxu0 0
    %225 = vmatprep.subr.bf16.mxu0 0
    %226 = vmatpush1.bf16.msra.mxu0 0
    %227 = vmatprep.subr.bf16.mxu0 0
    %228 = vmatpush1.bf16.msra.mxu0 0
    %229 = vmatprep.subr.bf16.mxu0 0
    %230 = vmatpush1.bf16.msra.mxu0 0
    %231 = vmatprep.subr.bf16.mxu0 0
    %232 = vmatpush1.bf16.msra.mxu0 0
    %233 = vmatprep.subr.bf16.mxu0 0
    %234 = vmatpush1.bf16.msra.mxu0 0
    %235 = vmatprep.subr.bf16.mxu0 0
    %236 = vmatpush1.bf16.msra.mxu0 0
    %237 = vmatprep.subr.bf16.mxu0 0
    %238 = vmatpush1.bf16.msra.mxu0 0
    %239 = vmatprep.subr.bf16.mxu0 0
    %240 = vmatpush1.bf16.msra.mxu0 0
    %241 = vmatprep.subr.bf16.mxu0 0
    %242 = vmatpush1.bf16.msra.mxu0 0
    %243 = vmatprep.mubr.bf16.mxu0 0
    %244 = vmatmul.mubr.bf16.gmra.mrb[0].mxu0 %v209
    %v245 = vpop.f32.mrb[0].mxu0
    %v246 = vadd.f32 0.0, %v245
    %v247 = vpop.f32.mrb[0].mxu0
    %v248 = vpop.f32.mrb[0].mxu0
    %v249 = vpop.f32.mrb[0].mxu0
    %250 = vdwg.mxu0
    %v251 = vadd.f32 %v16, %v246
    %252 = vrot.lane.b32.xlu0 %v87, 112
    %v253 = vpop.permute.xlu0 %252
    %254 = vrot.lane.b32.xlu0 %v87, 48
    %v255 = vpop.permute.xlu0 %254
    %v257 = vsel %vm92, %v253, 0
    %v260 = vsel %vm92, %v255, 0
    %262 = vmatprep.subr.bf16.mxu0 0
    %263 = vmatpush1.bf16.xpose.msra.mxu0 %v260
    %264 = vmatprep.subr.bf16.mxu0 0
    %265 = vmatpush1.bf16.xpose.msra.mxu0 0
    %266 = vmatprep.subr.bf16.mxu0 0
    %267 = vmatpush1.bf16.xpose.msra.mxu0 0
    %268 = vmatprep.subr.bf16.mxu0 0
    %269 = vmatpush1.bf16.xpose.msra.mxu0 0
    %270 = vmatprep.subr.bf16.mxu0 0
    %271 = vmatpush1.bf16.xpose.msra.mxu0 0
    %272 = vmatprep.subr.bf16.mxu0 0
    %273 = vmatpush1.bf16.xpose.msra.mxu0 0
    %274 = vmatprep.subr.bf16.mxu0 0
    %275 = vmatpush1.bf16.xpose.msra.mxu0 0
    %276 = vmatprep.subr.bf16.mxu0 0
    %277 = vmatpush1.bf16.xpose.msra.mxu0 0
    %278 = vmatprep.subr.bf16.mxu0 0
    %279 = vmatpush1.bf16.xpose.msra.mxu0 0
    %280 = vmatprep.subr.bf16.mxu0 0
    %281 = vmatpush1.bf16.xpose.msra.mxu0 0
    %282 = vmatprep.subr.bf16.mxu0 0
    %283 = vmatpush1.bf16.xpose.msra.mxu0 0
    %284 = vmatprep.subr.bf16.mxu0 0
    %285 = vmatpush1.bf16.xpose.msra.mxu0 0
    %286 = vmatprep.subr.bf16.mxu0 0
    %287 = vmatpush1.bf16.xpose.msra.mxu0 0
    %288 = vmatprep.subr.bf16.mxu0 0
    %289 = vmatpush1.bf16.xpose.msra.mxu0 0
    %290 = vmatprep.subr.bf16.mxu0 0
    %291 = vmatpush1.bf16.xpose.msra.mxu0 0
    %292 = vmatprep.subr.bf16.mxu0 0
    %293 = vmatpush1.bf16.xpose.msra.mxu0 0
    %294 = vmatprep.mubr.bf16.mxu0 0
    %295 = vmatmul.mubr.bf16.gmra.mrb[0].mxu0 %v257
    %v296 = vpop.f32.mrb[0].mxu0
    %v297 = vadd.f32 0.0, %v296
    %v298 = vpop.f32.mrb[0].mxu0
    %v299 = vpop.f32.mrb[0].mxu0
    %v300 = vpop.f32.mrb[0].mxu0
    %301 = vdwg.mxu0
    %v302 = vsel %vm139, %v297, -inf
    %303 = vmax.xlane.f32.xlu0 %v302
    %v304 = vpop.xlane.xlu0 %303
    %v305 = vsub.f32 %v297, %v304
    %v306 = vmul.f32 %v305, 1.442695
    %v307 = vpow.pop %v306
    %v308 = vsel %vm139, %v307, 0.0
    %309 = vadd.xlane.f32.xlu0 %v308
    %v310 = vpop.xlane.xlu0 %309
    %v311 = vrcp.pop %v310
    %v312 = vmul.f32 %v307, %v311
    %v313 = vpack.c.bf16 %v312, %v312
    %315 = vrot.lane.b32.xlu0 %v88, 112
    %v316 = vpop.permute.xlu0 %315
    %v318 = vsel %vm139, %v313, 0
    %v321 = vsel %vm155, %v316, 0
    %323 = vmatprep.subr.bf16.mxu0 0
    %324 = vmatpush1.bf16.msra.mxu0 %v321
    %325 = vmatprep.subr.bf16.mxu0 0
    %326 = vmatpush1.bf16.msra.mxu0 0
    %327 = vmatprep.subr.bf16.mxu0 0
    %328 = vmatpush1.bf16.msra.mxu0 0
    %329 = vmatprep.subr.bf16.mxu0 0
    %330 = vmatpush1.bf16.msra.mxu0 0
    %331 = vmatprep.subr.bf16.mxu0 0
    %332 = vmatpush1.bf16.msra.mxu0 0
    %333 = vmatprep.subr.bf16.mxu0 0
    %334 = vmatpush1.bf16.msra.mxu0 0
    %335 = vmatprep.subr.bf16.mxu0 0
    %336 = vmatpush1.bf16.msra.mxu0 0
    %337 = vmatprep.subr.bf16.mxu0 0
    %338 = vmatpush1.bf16.msra.mxu0 0
    %339 = vmatprep.subr.bf16.mxu0 0
    %340 = vmatpush1.bf16.msra.mxu0 0
    %341 = vmatprep.subr.bf16.mxu0 0
    %342 = vmatpush1.bf16.msra.mxu0 0
    %343 = vmatprep.subr.bf16.mxu0 0
    %344 = vmatpush1.bf16.msra.mxu0 0
    %345 = vmatprep.subr.bf16.mxu0 0
    %346 = vmatpush1.bf16.msra.mxu0 0
    %347 = vmatprep.subr.bf16.mxu0 0
    %348 = vmatpush1.bf16.msra.mxu0 0
    %349 = vmatprep.subr.bf16.mxu0 0
    %350 = vmatpush1.bf16.msra.mxu0 0
    %351 = vmatprep.subr.bf16.mxu0 0
    %352 = vmatpush1.bf16.msra.mxu0 0
    %353 = vmatprep.subr.bf16.mxu0 0
    %354 = vmatpush1.bf16.msra.mxu0 0
    %355 = vmatprep.mubr.bf16.mxu0 0
    %356 = vmatmul.mubr.bf16.gmra.mrb[0].mxu0 %v318
    %v357 = vpop.f32.mrb[0].mxu0
    %v358 = vadd.f32 0.0, %v357
    %v359 = vpop.f32.mrb[0].mxu0
    %v360 = vpop.f32.mrb[0].mxu0
    %v361 = vpop.f32.mrb[0].mxu0
    %362 = vdwg.mxu0
    %v363 = vpack.c.bf16 %v358, %v358
    %s364 = scalar_lea.vmem %s2, 8
    %v365 = vld [vmem:[%s364] sm:$0xf]
    %v366 = vld [vmem:[%s364 + $0x4] sm:$0xf]
    %v369 = vunpack.c.l.b16 %v365
    %v370 = vunpack.c.l.b16 %v366
    %v371 = vpack.c.b16 %v370, %v369
    %v374 = vsel %vm92, %v363, 0
    %376 = vmatprep.subr.bf16.mxu0 0
    %377 = vmatpush1.bf16.msra.mxu0 %v371
    %378 = vmatprep.subr.bf16.mxu0 0
    %379 = vmatpush1.bf16.msra.mxu0 0
    %380 = vmatprep.subr.bf16.mxu0 0
    %381 = vmatpush1.bf16.msra.mxu0 0
    %382 = vmatprep.subr.bf16.mxu0 0
    %383 = vmatpush1.bf16.msra.mxu0 0
    %384 = vmatprep.subr.bf16.mxu0 0
    %385 = vmatpush1.bf16.msra.mxu0 0
    %386 = vmatprep.subr.bf16.mxu0 0
    %387 = vmatpush1.bf16.msra.mxu0 0
    %388 = vmatprep.subr.bf16.mxu0 0
    %389 = vmatpush1.bf16.msra.mxu0 0
    %390 = vmatprep.subr.bf16.mxu0 0
    %391 = vmatpush1.bf16.msra.mxu0 0
    %392 = vmatprep.subr.bf16.mxu0 0
    %393 = vmatpush1.bf16.msra.mxu0 0
    %394 = vmatprep.subr.bf16.mxu0 0
    %395 = vmatpush1.bf16.msra.mxu0 0
    %396 = vmatprep.subr.bf16.mxu0 0
    %397 = vmatpush1.bf16.msra.mxu0 0
    %398 = vmatprep.subr.bf16.mxu0 0
    %399 = vmatpush1.bf16.msra.mxu0 0
    %400 = vmatprep.subr.bf16.mxu0 0
    %401 = vmatpush1.bf16.msra.mxu0 0
    %402 = vmatprep.subr.bf16.mxu0 0
    %403 = vmatpush1.bf16.msra.mxu0 0
    %404 = vmatprep.subr.bf16.mxu0 0
    %405 = vmatpush1.bf16.msra.mxu0 0
    %406 = vmatprep.subr.bf16.mxu0 0
    %407 = vmatpush1.bf16.msra.mxu0 0
    %408 = vmatprep.mubr.bf16.mxu0 0
    %409 = vmatmul.mubr.bf16.gmra.mrb[0].mxu0 %v374
    %v410 = vpop.f32.mrb[0].mxu0
    %v411 = vadd.f32 0.0, %v410
    %v412 = vpop.f32.mrb[0].mxu0
    %v413 = vpop.f32.mrb[0].mxu0
    %v414 = vpop.f32.mrb[0].mxu0
    %415 = vdwg.mxu0
    %v416 = vadd.f32 %v251, %v411
    %417 = vrot.lane.b32.xlu0 %v87, 96
    %v418 = vpop.permute.xlu0 %417
    %419 = vrot.lane.b32.xlu0 %v87, 32
    %v420 = vpop.permute.xlu0 %419
    %v422 = vsel %vm92, %v418, 0
    %v425 = vsel %vm92, %v420, 0
    %427 = vmatprep.subr.bf16.mxu0 0
    %428 = vmatpush1.bf16.xpose.msra.mxu0 %v425
    %429 = vmatprep.subr.bf16.mxu0 0
    %430 = vmatpush1.bf16.xpose.msra.mxu0 0
    %431 = vmatprep.subr.bf16.mxu0 0
    %432 = vmatpush1.bf16.xpose.msra.mxu0 0
    %433 = vmatprep.subr.bf16.mxu0 0
    %434 = vmatpush1.bf16.xpose.msra.mxu0 0
    %435 = vmatprep.subr.bf16.mxu0 0
    %436 = vmatpush1.bf16.xpose.msra.mxu0 0
    %437 = vmatprep.subr.bf16.mxu0 0
    %438 = vmatpush1.bf16.xpose.msra.mxu0 0
    %439 = vmatprep.subr.bf16.mxu0 0
    %440 = vmatpush1.bf16.xpose.msra.mxu0 0
    %441 = vmatprep.subr.bf16.mxu0 0
    %442 = vmatpush1.bf16.xpose.msra.mxu0 0
    %443 = vmatprep.subr.bf16.mxu0 0
    %444 = vmatpush1.bf16.xpose.msra.mxu0 0
    %445 = vmatprep.subr.bf16.mxu0 0
    %446 = vmatpush1.bf16.xpose.msra.mxu0 0
    %447 = vmatprep.subr.bf16.mxu0 0
    %448 = vmatpush1.bf16.xpose.msra.mxu0 0
    %449 = vmatprep.subr.bf16.mxu0 0
    %450 = vmatpush1.bf16.xpose.msra.mxu0 0
    %451 = vmatprep.subr.bf16.mxu0 0
    %452 = vmatpush1.bf16.xpose.msra.mxu0 0
    %453 = vmatprep.subr.bf16.mxu0 0
    %454 = vmatpush1.bf16.xpose.msra.mxu0 0
    %455 = vmatprep.subr.bf16.mxu0 0
    %456 = vmatpush1.bf16.xpose.msra.mxu0 0
    %457 = vmatprep.subr.bf16.mxu0 0
    %458 = vmatpush1.bf16.xpose.msra.mxu0 0
    %459 = vmatprep.mubr.bf16.mxu0 0
    %460 = vmatmul.mubr.bf16.gmra.mrb[0].mxu0 %v422
    %v461 = vpop.f32.mrb[0].mxu0
    %v462 = vadd.f32 0.0, %v461
    %v463 = vpop.f32.mrb[0].mxu0
    %v464 = vpop.f32.mrb[0].mxu0
    %v465 = vpop.f32.mrb[0].mxu0
    %466 = vdwg.mxu0
    %v467 = vsel %vm139, %v462, -inf
    %468 = vmax.xlane.f32.xlu0 %v467
    %v469 = vpop.xlane.xlu0 %468
    %v470 = vsub.f32 %v462, %v469
    %v471 = vmul.f32 %v470, 1.442695
    %v472 = vpow.pop %v471
    %v473 = vsel %vm139, %v472, 0.0
    %474 = vadd.xlane.f32.xlu0 %v473
    %v475 = vpop.xlane.xlu0 %474
    %v476 = vrcp.pop %v475
    %v477 = vmul.f32 %v472, %v476
    %v478 = vpack.c.bf16 %v477, %v477
    %479 = vrot.lane.b32.xlu0 %v88, 96
    %v480 = vpop.permute.xlu0 %479
    %v482 = vsel %vm139, %v478, 0
    %v485 = vsel %vm155, %v480, 0
    %487 = vmatprep.subr.bf16.mxu0 0
    %488 = vmatpush1.bf16.msra.mxu0 %v485
    %489 = vmatprep.subr.bf16.mxu0 0
    %490 = vmatpush1.bf16.msra.mxu0 0
    %491 = vmatprep.subr.bf16.mxu0 0
    %492 = vmatpush1.bf16.msra.mxu0 0
    %493 = vmatprep.subr.bf16.mxu0 0
    %494 = vmatpush1.bf16.msra.mxu0 0
    %495 = vmatprep.subr.bf16.mxu0 0
    %496 = vmatpush1.bf16.msra.mxu0 0
    %497 = vmatprep.subr.bf16.mxu0 0
    %498 = vmatpush1.bf16.msra.mxu0 0
    %499 = vmatprep.subr.bf16.mxu0 0
    %500 = vmatpush1.bf16.msra.mxu0 0
    %501 = vmatprep.subr.bf16.mxu0 0
    %502 = vmatpush1.bf16.msra.mxu0 0
    %503 = vmatprep.subr.bf16.mxu0 0
    %504 = vmatpush1.bf16.msra.mxu0 0
    %505 = vmatprep.subr.bf16.mxu0 0
    %506 = vmatpush1.bf16.msra.mxu0 0
    %507 = vmatprep.subr.bf16.mxu0 0
    %508 = vmatpush1.bf16.msra.mxu0 0
    %509 = vmatprep.subr.bf16.mxu0 0
    %510 = vmatpush1.bf16.msra.mxu0 0
    %511 = vmatprep.subr.bf16.mxu0 0
    %512 = vmatpush1.bf16.msra.mxu0 0
    %513 = vmatprep.subr.bf16.mxu0 0
    %514 = vmatpush1.bf16.msra.mxu0 0
    %515 = vmatprep.subr.bf16.mxu0 0
    %516 = vmatpush1.bf16.msra.mxu0 0
    %517 = vmatprep.subr.bf16.mxu0 0
    %518 = vmatpush1.bf16.msra.mxu0 0
    %519 = vmatprep.mubr.bf16.mxu0 0
    %520 = vmatmul.mubr.bf16.gmra.mrb[0].mxu0 %v482
    %v521 = vpop.f32.mrb[0].mxu0
    %v522 = vadd.f32 0.0, %v521
    %v523 = vpop.f32.mrb[0].mxu0
    %v524 = vpop.f32.mrb[0].mxu0
    %v525 = vpop.f32.mrb[0].mxu0
    %526 = vdwg.mxu0
    %v527 = vpack.c.bf16 %v522, %v522
    %s528 = scalar_lea.vmem %s2, 16
    %v529 = vld [vmem:[%s528] sm:$0xf]
    %v530 = vld [vmem:[%s528 + $0x4] sm:$0xf]
    %v533 = vunpack.c.l.b16 %v529
    %v534 = vunpack.c.l.b16 %v530
    %v535 = vpack.c.b16 %v534, %v533
    %v538 = vsel %vm92, %v527, 0
    %540 = vmatprep.subr.bf16.mxu0 0
    %541 = vmatpush1.bf16.msra.mxu0 %v535
    %542 = vmatprep.subr.bf16.mxu0 0
    %543 = vmatpush1.bf16.msra.mxu0 0
    %544 = vmatprep.subr.bf16.mxu0 0
    %545 = vmatpush1.bf16.msra.mxu0 0
    %546 = vmatprep.subr.bf16.mxu0 0
    %547 = vmatpush1.bf16.msra.mxu0 0
    %548 = vmatprep.subr.bf16.mxu0 0
    %549 = vmatpush1.bf16.msra.mxu0 0
    %550 = vmatprep.subr.bf16.mxu0 0
    %551 = vmatpush1.bf16.msra.mxu0 0
    %552 = vmatprep.subr.bf16.mxu0 0
    %553 = vmatpush1.bf16.msra.mxu0 0
    %554 = vmatprep.subr.bf16.mxu0 0
    %555 = vmatpush1.bf16.msra.mxu0 0
    %556 = vmatprep.subr.bf16.mxu0 0
    %557 = vmatpush1.bf16.msra.mxu0 0
    %558 = vmatprep.subr.bf16.mxu0 0
    %559 = vmatpush1.bf16.msra.mxu0 0
    %560 = vmatprep.subr.bf16.mxu0 0
    %561 = vmatpush1.bf16.msra.mxu0 0
    %562 = vmatprep.subr.bf16.mxu0 0
    %563 = vmatpush1.bf16.msra.mxu0 0
    %564 = vmatprep.subr.bf16.mxu0 0
    %565 = vmatpush1.bf16.msra.mxu0 0
    %566 = vmatprep.subr.bf16.mxu0 0
    %567 = vmatpush1.bf16.msra.mxu0 0
    %568 = vmatprep.subr.bf16.mxu0 0
    %569 = vmatpush1.bf16.msra.mxu0 0
    %570 = vmatprep.subr.bf16.mxu0 0
    %571 = vmatpush1.bf16.msra.mxu0 0
    %572 = vmatprep.mubr.bf16.mxu0 0
    %573 = vmatmul.mubr.bf16.gmra.mrb[0].mxu0 %v538
    %v574 = vpop.f32.mrb[0].mxu0
    %v575 = vadd.f32 0.0, %v574
    %v576 = vpop.f32.mrb[0].mxu0
    %v577 = vpop.f32.mrb[0].mxu0
    %v578 = vpop.f32.mrb[0].mxu0
    %579 = vdwg.mxu0
    %v580 = vadd.f32 %v416, %v575
    %581 = vrot.lane.b32.xlu0 %v87, 80
    %v582 = vpop.permute.xlu0 %581
    %583 = vrot.lane.b32.xlu0 %v87, 16
    %v584 = vpop.permute.xlu0 %583
    %v586 = vsel %vm92, %v582, 0
    %v589 = vsel %vm92, %v584, 0
    %591 = vmatprep.subr.bf16.mxu0 0
    %592 = vmatpush1.bf16.xpose.msra.mxu0 %v589
    %593 = vmatprep.subr.bf16.mxu0 0
    %594 = vmatpush1.bf16.xpose.msra.mxu0 0
    %595 = vmatprep.subr.bf16.mxu0 0
    %596 = vmatpush1.bf16.xpose.msra.mxu0 0
    %597 = vmatprep.subr.bf16.mxu0 0
    %598 = vmatpush1.bf16.xpose.msra.mxu0 0
    %599 = vmatprep.subr.bf16.mxu0 0
    %600 = vmatpush1.bf16.xpose.msra.mxu0 0
    %601 = vmatprep.subr.bf16.mxu0 0
    %602 = vmatpush1.bf16.xpose.msra.mxu0 0
    %603 = vmatprep.subr.bf16.mxu0 0
    %604 = vmatpush1.bf16.xpose.msra.mxu0 0
    %605 = vmatprep.subr.bf16.mxu0 0
    %606 = vmatpush1.bf16.xpose.msra.mxu0 0
    %607 = vmatprep.subr.bf16.mxu0 0
    %608 = vmatpush1.bf16.xpose.msra.mxu0 0
    %609 = vmatprep.subr.bf16.mxu0 0
    %610 = vmatpush1.bf16.xpose.msra.mxu0 0
    %611 = vmatprep.subr.bf16.mxu0 0
    %612 = vmatpush1.bf16.xpose.msra.mxu0 0
    %613 = vmatprep.subr.bf16.mxu0 0
    %614 = vmatpush1.bf16.xpose.msra.mxu0 0
    %615 = vmatprep.subr.bf16.mxu0 0
    %616 = vmatpush1.bf16.xpose.msra.mxu0 0
    %617 = vmatprep.subr.bf16.mxu0 0
    %618 = vmatpush1.bf16.xpose.msra.mxu0 0
    %619 = vmatprep.subr.bf16.mxu0 0
    %620 = vmatpush1.bf16.xpose.msra.mxu0 0
    %621 = vmatprep.subr.bf16.mxu0 0
    %622 = vmatpush1.bf16.xpose.msra.mxu0 0
    %623 = vmatprep.mubr.bf16.mxu0 0
    %624 = vmatmul.mubr.bf16.gmra.mrb[0].mxu0 %v586
    %v625 = vpop.f32.mrb[0].mxu0
    %v626 = vadd.f32 0.0, %v625
    %v627 = vpop.f32.mrb[0].mxu0
    %v628 = vpop.f32.mrb[0].mxu0
    %v629 = vpop.f32.mrb[0].mxu0
    %630 = vdwg.mxu0
    %v631 = vsel %vm139, %v626, -inf
    %632 = vmax.xlane.f32.xlu0 %v631
    %v633 = vpop.xlane.xlu0 %632
    %v634 = vsub.f32 %v626, %v633
    %v635 = vmul.f32 %v634, 1.442695
    %v636 = vpow.pop %v635
    %v637 = vsel %vm139, %v636, 0.0
    %638 = vadd.xlane.f32.xlu0 %v637
    %v639 = vpop.xlane.xlu0 %638
    %v640 = vrcp.pop %v639
    %v641 = vmul.f32 %v636, %v640
    %v642 = vpack.c.bf16 %v641, %v641
    %643 = vrot.lane.b32.xlu0 %v88, 80
    %v644 = vpop.permute.xlu0 %643
    %v646 = vsel %vm139, %v642, 0
    %v649 = vsel %vm155, %v644, 0
    %651 = vmatprep.subr.bf16.mxu0 0
    %652 = vmatpush1.bf16.msra.mxu0 %v649
    %653 = vmatprep.subr.bf16.mxu0 0
    %654 = vmatpush1.bf16.msra.mxu0 0
    %655 = vmatprep.subr.bf16.mxu0 0
    %656 = vmatpush1.bf16.msra.mxu0 0
    %657 = vmatprep.subr.bf16.mxu0 0
    %658 = vmatpush1.bf16.msra.mxu0 0
    %659 = vmatprep.subr.bf16.mxu0 0
    %660 = vmatpush1.bf16.msra.mxu0 0
    %661 = vmatprep.subr.bf16.mxu0 0
    %662 = vmatpush1.bf16.msra.mxu0 0
    %663 = vmatprep.subr.bf16.mxu0 0
    %664 = vmatpush1.bf16.msra.mxu0 0
    %665 = vmatprep.subr.bf16.mxu0 0
    %666 = vmatpush1.bf16.msra.mxu0 0
    %667 = vmatprep.subr.bf16.mxu0 0
    %668 = vmatpush1.bf16.msra.mxu0 0
    %669 = vmatprep.subr.bf16.mxu0 0
    %670 = vmatpush1.bf16.msra.mxu0 0
    %671 = vmatprep.subr.bf16.mxu0 0
    %672 = vmatpush1.bf16.msra.mxu0 0
    %673 = vmatprep.subr.bf16.mxu0 0
    %674 = vmatpush1.bf16.msra.mxu0 0
    %675 = vmatprep.subr.bf16.mxu0 0
    %676 = vmatpush1.bf16.msra.mxu0 0
    %677 = vmatprep.subr.bf16.mxu0 0
    %678 = vmatpush1.bf16.msra.mxu0 0
    %679 = vmatprep.subr.bf16.mxu0 0
    %680 = vmatpush1.bf16.msra.mxu0 0
    %681 = vmatprep.subr.bf16.mxu0 0
    %682 = vmatpush1.bf16.msra.mxu0 0
    %683 = vmatprep.mubr.bf16.mxu0 0
    %684 = vmatmul.mubr.bf16.gmra.mrb[0].mxu0 %v646
    %v685 = vpop.f32.mrb[0].mxu0
    %v686 = vadd.f32 0.0, %v685
    %v687 = vpop.f32.mrb[0].mxu0
    %v688 = vpop.f32.mrb[0].mxu0
    %v689 = vpop.f32.mrb[0].mxu0
    %690 = vdwg.mxu0
    %v691 = vpack.c.bf16 %v686, %v686
    %s692 = scalar_lea.vmem %s2, 24
    %v693 = vld [vmem:[%s692] sm:$0xf]
    %v694 = vld [vmem:[%s692 + $0x4] sm:$0xf]
    %v697 = vunpack.c.l.b16 %v693
    %v698 = vunpack.c.l.b16 %v694
    %v699 = vpack.c.b16 %v698, %v697
    %v702 = vsel %vm92, %v691, 0
    %704 = vmatprep.subr.bf16.mxu0 0
    %705 = vmatpush1.bf16.msra.mxu0 %v699
    %706 = vmatprep.subr.bf16.mxu0 0
    %707 = vmatpush1.bf16.msra.mxu0 0
    %708 = vmatprep.subr.bf16.mxu0 0
    %709 = vmatpush1.bf16.msra.mxu0 0
    %710 = vmatprep.subr.bf16.mxu0 0
    %711 = vmatpush1.bf16.msra.mxu0 0
    %712 = vmatprep.subr.bf16.mxu0 0
    %713 = vmatpush1.bf16.msra.mxu0 0
    %714 = vmatprep.subr.bf16.mxu0 0
    %715 = vmatpush1.bf16.msra.mxu0 0
    %716 = vmatprep.subr.bf16.mxu0 0
    %717 = vmatpush1.bf16.msra.mxu0 0
    %718 = vmatprep.subr.bf16.mxu0 0
    %719 = vmatpush1.bf16.msra.mxu0 0
    %720 = vmatprep.subr.bf16.mxu0 0
    %721 = vmatpush1.bf16.msra.mxu0 0
    %722 = vmatprep.subr.bf16.mxu0 0
    %723 = vmatpush1.bf16.msra.mxu0 0
    %724 = vmatprep.subr.bf16.mxu0 0
    %725 = vmatpush1.bf16.msra.mxu0 0
    %726 = vmatprep.subr.bf16.mxu0 0
    %727 = vmatpush1.bf16.msra.mxu0 0
    %728 = vmatprep.subr.bf16.mxu0 0
    %729 = vmatpush1.bf16.msra.mxu0 0
    %730 = vmatprep.subr.bf16.mxu0 0
    %731 = vmatpush1.bf16.msra.mxu0 0
    %732 = vmatprep.subr.bf16.mxu0 0
    %733 = vmatpush1.bf16.msra.mxu0 0
    %734 = vmatprep.subr.bf16.mxu0 0
    %735 = vmatpush1.bf16.msra.mxu0 0
    %736 = vmatprep.mubr.bf16.mxu0 0
    %737 = vmatmul.mubr.bf16.gmra.mrb[0].mxu0 %v702
    %v738 = vpop.f32.mrb[0].mxu0
    %v739 = vadd.f32 0.0, %v738
    %v740 = vpop.f32.mrb[0].mxu0
    %v741 = vpop.f32.mrb[0].mxu0
    %v742 = vpop.f32.mrb[0].mxu0
    %743 = vdwg.mxu0
    %v744 = vadd.f32 %v580, %v739
    %745 = vst.msk [vmem:[#allocation2] sm:$0xff] %vm42, %v744
    %s746 = scalar_lea.vmem %s0, 8
    %v747 = vld [vmem:[%s746] sm:$0xff]
    %v748 = vpack.c.bf16 %v747, %v747
    %v749 = vld [vmem:[%s1] sm:$0xff]
    %v750 = vld [vmem:[%s1 + $0x8] sm:$0xff]
    %v751 = vld [vmem:[%s1 + $0x10] sm:$0xff]
    %v752 = vld [vmem:[%s1 + $0x18] sm:$0xff]
    %v757 = vunpack.c.l.b16 %v749
    %v758 = vunpack.c.h.b16 %v749
    %v759 = vunpack.c.l.b16 %v750
    %v760 = vunpack.c.h.b16 %v750
    %v761 = vunpack.c.l.b16 %v751
    %v762 = vunpack.c.h.b16 %v751
    %v763 = vunpack.c.l.b16 %v752
    %v764 = vunpack.c.h.b16 %v752
    %v765 = vpack.c.b16 %v759, %v757
    %v766 = vpack.c.b16 %v760, %v758
    %v767 = vpack.c.b16 %v763, %v761
    %v768 = vpack.c.b16 %v764, %v762
    %v774 = vsel %vm42, %v748, 0
    %776 = vmatprep.subr.bf16.mxu0 %v766
    %777 = vmatpush1.bf16.msra.mxu0 %v765
    %778 = vmatprep.subr.bf16.mxu0 %v768
    %779 = vmatpush1.bf16.msra.mxu0 %v767
    %780 = vmatprep.subr.bf16.mxu0 0
    %781 = vmatpush1.bf16.msra.mxu0 0
    %782 = vmatprep.subr.bf16.mxu0 0
    %783 = vmatpush1.bf16.msra.mxu0 0
    %784 = vmatprep.subr.bf16.mxu0 0
    %785 = vmatpush1.bf16.msra.mxu0 0
    %786 = vmatprep.subr.bf16.mxu0 0
    %787 = vmatpush1.bf16.msra.mxu0 0
    %788 = vmatprep.subr.bf16.mxu0 0
    %789 = vmatpush1.bf16.msra.mxu0 0
    %790 = vmatprep.subr.bf16.mxu0 0
    %791 = vmatpush1.bf16.msra.mxu0 0
    %792 = vmatprep.subr.bf16.mxu0 0
    %793 = vmatpush1.bf16.msra.mxu0 0
    %794 = vmatprep.subr.bf16.mxu0 0
    %795 = vmatpush1.bf16.msra.mxu0 0
    %796 = vmatprep.subr.bf16.mxu0 0
    %797 = vmatpush1.bf16.msra.mxu0 0
    %798 = vmatprep.subr.bf16.mxu0 0
    %799 = vmatpush1.bf16.msra.mxu0 0
    %800 = vmatprep.subr.bf16.mxu0 0
    %801 = vmatpush1.bf16.msra.mxu0 0
    %802 = vmatprep.subr.bf16.mxu0 0
    %803 = vmatpush1.bf16.msra.mxu0 0
    %804 = vmatprep.subr.bf16.mxu0 0
    %805 = vmatpush1.bf16.msra.mxu0 0
    %806 = vmatprep.subr.bf16.mxu0 0
    %807 = vmatpush1.bf16.msra.mxu0 0
    %808 = vmatprep.mubr.bf16.mxu0 0
    %809 = vmatmul.mubr.bf16.gmra.mrb[0].mxu0 %v774
    %v810 = vpop.f32.mrb[0].mxu0
    %v811 = vadd.f32 0.0, %v810
    %v812 = vpop.f32.mrb[0].mxu0
    %v813 = vadd.f32 0.0, %v812
    %v814 = vpop.f32.mrb[0].mxu0
    %v815 = vpop.f32.mrb[0].mxu0
    %816 = vdwg.mxu0
    %v817 = vpack.c.bf16 %v811, %v811
    %v818 = vpack.c.bf16 %v813, %v813
    %820 = vrot.lane.b32.xlu0 %v817, 64
    %v821 = vpop.permute.xlu0 %820
    %v823 = vsel %vm92, %v817, 0
    %v826 = vsel %vm92, %v821, 0
    %828 = vmatprep.subr.bf16.mxu0 0
    %829 = vmatpush1.bf16.xpose.msra.mxu0 %v826
    %830 = vmatprep.subr.bf16.mxu0 0
    %831 = vmatpush1.bf16.xpose.msra.mxu0 0
    %832 = vmatprep.subr.bf16.mxu0 0
    %833 = vmatpush1.bf16.xpose.msra.mxu0 0
    %834 = vmatprep.subr.bf16.mxu0 0
    %835 = vmatpush1.bf16.xpose.msra.mxu0 0
    %836 = vmatprep.subr.bf16.mxu0 0
    %837 = vmatpush1.bf16.xpose.msra.mxu0 0
    %838 = vmatprep.subr.bf16.mxu0 0
    %839 = vmatpush1.bf16.xpose.msra.mxu0 0
    %840 = vmatprep.subr.bf16.mxu0 0
    %841 = vmatpush1.bf16.xpose.msra.mxu0 0
    %842 = vmatprep.subr.bf16.mxu0 0
    %843 = vmatpush1.bf16.xpose.msra.mxu0 0
    %844 = vmatprep.subr.bf16.mxu0 0
    %845 = vmatpush1.bf16.xpose.msra.mxu0 0
    %846 = vmatprep.subr.bf16.mxu0 0
    %847 = vmatpush1.bf16.xpose.msra.mxu0 0
    %848 = vmatprep.subr.bf16.mxu0 0
    %849 = vmatpush1.bf16.xpose.msra.mxu0 0
    %850 = vmatprep.subr.bf16.mxu0 0
    %851 = vmatpush1.bf16.xpose.msra.mxu0 0
    %852 = vmatprep.subr.bf16.mxu0 0
    %853 = vmatpush1.bf16.xpose.msra.mxu0 0
    %854 = vmatprep.subr.bf16.mxu0 0
    %855 = vmatpush1.bf16.xpose.msra.mxu0 0
    %856 = vmatprep.subr.bf16.mxu0 0
    %857 = vmatpush1.bf16.xpose.msra.mxu0 0
    %858 = vmatprep.subr.bf16.mxu0 0
    %859 = vmatpush1.bf16.xpose.msra.mxu0 0
    %860 = vmatprep.mubr.bf16.mxu0 0
    %861 = vmatmul.mubr.bf16.gmra.mrb[0].mxu0 %v823
    %v862 = vpop.f32.mrb[0].mxu0
    %v863 = vadd.f32 0.0, %v862
    %v864 = vpop.f32.mrb[0].mxu0
    %v865 = vpop.f32.mrb[0].mxu0
    %v866 = vpop.f32.mrb[0].mxu0
    %867 = vdwg.mxu0
    %v868 = vsel %vm139, %v863, -inf
    %869 = vmax.xlane.f32.xlu0 %v868
    %v870 = vpop.xlane.xlu0 %869
    %v871 = vsub.f32 %v863, %v870
    %v872 = vmul.f32 %v871, 1.442695
    %v873 = vpow.pop %v872
    %v874 = vsel %vm139, %v873, 0.0
    %875 = vadd.xlane.f32.xlu0 %v874
    %v876 = vpop.xlane.xlu0 %875
    %v877 = vrcp.pop %v876
    %v878 = vmul.f32 %v873, %v877
    %v879 = vpack.c.bf16 %v878, %v878
    %v881 = vsel %vm139, %v879, 0
    %v884 = vsel %vm155, %v818, 0
    %886 = vmatprep.subr.bf16.mxu0 0
    %887 = vmatpush1.bf16.msra.mxu0 %v884
    %888 = vmatprep.subr.bf16.mxu0 0
    %889 = vmatpush1.bf16.msra.mxu0 0
    %890 = vmatprep.subr.bf16.mxu0 0
    %891 = vmatpush1.bf16.msra.mxu0 0
    %892 = vmatprep.subr.bf16.mxu0 0
    %893 = vmatpush1.bf16.msra.mxu0 0
    %894 = vmatprep.subr.bf16.mxu0 0
    %895 = vmatpush1.bf16.msra.mxu0 0
    %896 = vmatprep.subr.bf16.mxu0 0
    %897 = vmatpush1.bf16.msra.mxu0 0
    %898 = vmatprep.subr.bf16.mxu0 0
    %899 = vmatpush1.bf16.msra.mxu0 0
    %900 = vmatprep.subr.bf16.mxu0 0
    %901 = vmatpush1.bf16.msra.mxu0 0
    %902 = vmatprep.subr.bf16.mxu0 0
    %903 = vmatpush1.bf16.msra.mxu0 0
    %904 = vmatprep.subr.bf16.mxu0 0
    %905 = vmatpush1.bf16.msra.mxu0 0
    %906 = vmatprep.subr.bf16.mxu0 0
    %907 = vmatpush1.bf16.msra.mxu0 0
    %908 = vmatprep.subr.bf16.mxu0 0
    %909 = vmatpush1.bf16.msra.mxu0 0
    %910 = vmatprep.subr.bf16.mxu0 0
    %911 = vmatpush1.bf16.msra.mxu0 0
    %912 = vmatprep.subr.bf16.mxu0 0
    %913 = vmatpush1.bf16.msra.mxu0 0
    %914 = vmatprep.subr.bf16.mxu0 0
    %915 = vmatpush1.bf16.msra.mxu0 0
    %916 = vmatprep.subr.bf16.mxu0 0
    %917 = vmatpush1.bf16.msra.mxu0 0
    %918 = vmatprep.mubr.bf16.mxu0 0
    %919 = vmatmul.mubr.bf16.gmra.mrb[0].mxu0 %v881
    %v920 = vpop.f32.mrb[0].mxu0
    %v921 = vadd.f32 0.0, %v920
    %v922 = vpop.f32.mrb[0].mxu0
    %v923 = vpop.f32.mrb[0].mxu0
    %v924 = vpop.f32.mrb[0].mxu0
    %925 = vdwg.mxu0
    %v926 = vpack.c.bf16 %v921, %v921
    %v927 = vld [vmem:[%s2] sm:$0xf]
    %v928 = vld [vmem:[%s2 + $0x4] sm:$0xf]
    %v931 = vunpack.c.l.b16 %v927
    %v932 = vunpack.c.l.b16 %v928
    %v933 = vpack.c.b16 %v932, %v931
    %v936 = vsel %vm92, %v926, 0
    %938 = vmatprep.subr.bf16.mxu0 0
    %939 = vmatpush1.bf16.msra.mxu0 %v933
    %940 = vmatprep.subr.bf16.mxu0 0
    %941 = vmatpush1.bf16.msra.mxu0 0
    %942 = vmatprep.subr.bf16.mxu0 0
    %943 = vmatpush1.bf16.msra.mxu0 0
    %944 = vmatprep.subr.bf16.mxu0 0
    %945 = vmatpush1.bf16.msra.mxu0 0
    %946 = vmatprep.subr.bf16.mxu0 0
    %947 = vmatpush1.bf16.msra.mxu0 0
    %948 = vmatprep.subr.bf16.mxu0 0
    %949 = vmatpush1.bf16.msra.mxu0 0
    %950 = vmatprep.subr.bf16.mxu0 0
    %951 = vmatpush1.bf16.msra.mxu0 0
    %952 = vmatprep.subr.bf16.mxu0 0
    %953 = vmatpush1.bf16.msra.mxu0 0
    %954 = vmatprep.subr.bf16.mxu0 0
    %955 = vmatpush1.bf16.msra.mxu0 0
    %956 = vmatprep.subr.bf16.mxu0 0
    %957 = vmatpush1.bf16.msra.mxu0 0
    %958 = vmatprep.subr.bf16.mxu0 0
    %959 = vmatpush1.bf16.msra.mxu0 0
    %960 = vmatprep.subr.bf16.mxu0 0
    %961 = vmatpush1.bf16.msra.mxu0 0
    %962 = vmatprep.subr.bf16.mxu0 0
    %963 = vmatpush1.bf16.msra.mxu0 0
    %964 = vmatprep.subr.bf16.mxu0 0
    %965 = vmatpush1.bf16.msra.mxu0 0
    %966 = vmatprep.subr.bf16.mxu0 0
    %967 = vmatpush1.bf16.msra.mxu0 0
    %968 = vmatprep.subr.bf16.mxu0 0
    %969 = vmatpush1.bf16.msra.mxu0 0
    %970 = vmatprep.mubr.bf16.mxu0 0
    %971 = vmatmul.mubr.bf16.gmra.mrb[0].mxu0 %v936
    %v972 = vpop.f32.mrb[0].mxu0
    %v973 = vadd.f32 0.0, %v972
    %v974 = vpop.f32.mrb[0].mxu0
    %v975 = vpop.f32.mrb[0].mxu0
    %v976 = vpop.f32.mrb[0].mxu0
    %977 = vdwg.mxu0
    %v978 = vadd.f32 %v747, %v973
    %979 = vrot.lane.b32.xlu0 %v817, 112
    %v980 = vpop.permute.xlu0 %979
    %981 = vrot.lane.b32.xlu0 %v817, 48
    %v982 = vpop.permute.xlu0 %981
    %v984 = vsel %vm92, %v980, 0
    %v987 = vsel %vm92, %v982, 0
    %989 = vmatprep.subr.bf16.mxu0 0
    %990 = vmatpush1.bf16.xpose.msra.mxu0 %v987
    %991 = vmatprep.subr.bf16.mxu0 0
    %992 = vmatpush1.bf16.xpose.msra.mxu0 0
    %993 = vmatprep.subr.bf16.mxu0 0
    %994 = vmatpush1.bf16.xpose.msra.mxu0 0
    %995 = vmatprep.subr.bf16.mxu0 0
    %996 = vmatpush1.bf16.xpose.msra.mxu0 0
    %997 = vmatprep.subr.bf16.mxu0 0
    %998 = vmatpush1.bf16.xpose.msra.mxu0 0
    %999 = vmatprep.subr.bf16.mxu0 0
    %1000 = vmatpush1.bf16.xpose.msra.mxu0 0
    %1001 = vmatprep.subr.bf16.mxu0 0
    %1002 = vmatpush1.bf16.xpose.msra.mxu0 0
    %1003 = vmatprep.subr.bf16.mxu0 0
    %1004 = vmatpush1.bf16.xpose.msra.mxu0 0
    %1005 = vmatprep.subr.bf16.mxu0 0
    %1006 = vmatpush1.bf16.xpose.msra.mxu0 0
    %1007 = vmatprep.subr.bf16.mxu0 0
    %1008 = vmatpush1.bf16.xpose.msra.mxu0 0
    %1009 = vmatprep.subr.bf16.mxu0 0
    %1010 = vmatpush1.bf16.xpose.msra.mxu0 0
    %1011 = vmatprep.subr.bf16.mxu0 0
    %1012 = vmatpush1.bf16.xpose.msra.mxu0 0
    %1013 = vmatprep.subr.bf16.mxu0 0
    %1014 = vmatpush1.bf16.xpose.msra.mxu0 0
    %1015 = vmatprep.subr.bf16.mxu0 0
    %1016 = vmatpush1.bf16.xpose.msra.mxu0 0
    %1017 = vmatprep.subr.bf16.mxu0 0
    %1018 = vmatpush1.bf16.xpose.msra.mxu0 0
    %1019 = vmatprep.subr.bf16.mxu0 0
    %1020 = vmatpush1.bf16.xpose.msra.mxu0 0
    %1021 = vmatprep.mubr.bf16.mxu0 0
    %1022 = vmatmul.mubr.bf16.gmra.mrb[0].mxu0 %v984
    %v1023 = vpop.f32.mrb[0].mxu0
    %v1024 = vadd.f32 0.0, %v1023
    %v1025 = vpop.f32.mrb[0].mxu0
    %v1026 = vpop.f32.mrb[0].mxu0
    %v1027 = vpop.f32.mrb[0].mxu0
    %1028 = vdwg.mxu0
    %v1029 = vsel %vm139, %v1024, -inf
    %1030 = vmax.xlane.f32.xlu0 %v1029
    %v1031 = vpop.xlane.xlu0 %1030
    %v1032 = vsub.f32 %v1024, %v1031
    %v1033 = vmul.f32 %v1032, 1.442695
    %v1034 = vpow.pop %v1033
    %v1035 = vsel %vm139, %v1034, 0.0
    %1036 = vadd.xlane.f32.xlu0 %v1035
    %v1037 = vpop.xlane.xlu0 %1036
    %v1038 = vrcp.pop %v1037
    %v1039 = vmul.f32 %v1034, %v1038
    %v1040 = vpack.c.bf16 %v1039, %v1039
    %1042 = vrot.lane.b32.xlu0 %v818, 112
    %v1043 = vpop.permute.xlu0 %1042
    %v1045 = vsel %vm139, %v1040, 0
    %v1048 = vsel %vm155, %v1043, 0
    %1050 = vmatprep.subr.bf16.mxu0 0
    %1051 = vmatpush1.bf16.msra.mxu0 %v1048
    %1052 = vmatprep.subr.bf16.mxu0 0
    %1053 = vmatpush1.bf16.msra.mxu0 0
    %1054 = vmatprep.subr.bf16.mxu0 0
    %1055 = vmatpush1.bf16.msra.mxu0 0
    %1056 = vmatprep.subr.bf16.mxu0 0
    %1057 = vmatpush1.bf16.msra.mxu0 0
    %1058 = vmatprep.subr.bf16.mxu0 0
    %1059 = vmatpush1.bf16.msra.mxu0 0
    %1060 = vmatprep.subr.bf16.mxu0 0
    %1061 = vmatpush1.bf16.msra.mxu0 0
    %1062 = vmatprep.subr.bf16.mxu0 0
    %1063 = vmatpush1.bf16.msra.mxu0 0
    %1064 = vmatprep.subr.bf16.mxu0 0
    %1065 = vmatpush1.bf16.msra.mxu0 0
    %1066 = vmatprep.subr.bf16.mxu0 0
    %1067 = vmatpush1.bf16.msra.mxu0 0
    %1068 = vmatprep.subr.bf16.mxu0 0
    %1069 = vmatpush1.bf16.msra.mxu0 0
    %1070 = vmatprep.subr.bf16.mxu0 0
    %1071 = vmatpush1.bf16.msra.mxu0 0
    %1072 = vmatprep.subr.bf16.mxu0 0
    %1073 = vmatpush1.bf16.msra.mxu0 0
    %1074 = vmatprep.subr.bf16.mxu0 0
    %1075 = vmatpush1.bf16.msra.mxu0 0
    %1076 = vmatprep.subr.bf16.mxu0 0
    %1077 = vmatpush1.bf16.msra.mxu0 0
    %1078 = vmatprep.subr.bf16.mxu0 0
    %1079 = vmatpush1.bf16.msra.mxu0 0
    %1080 = vmatprep.subr.bf16.mxu0 0
    %1081 = vmatpush1.bf16.msra.mxu0 0
    %1082 = vmatprep.mubr.bf16.mxu0 0
    %1083 = vmatmul.mubr.bf16.gmra.mrb[0].mxu0 %v1045
    %v1084 = vpop.f32.mrb[0].mxu0
    %v1085 = vadd.f32 0.0, %v1084
    %v1086 = vpop.f32.mrb[0].mxu0
    %v1087 = vpop.f32.mrb[0].mxu0
    %v1088 = vpop.f32.mrb[0].mxu0
    %1089 = vdwg.mxu0
    %v1090 = vpack.c.bf16 %v1085, %v1085
    %v1091 = vld [vmem:[%s364] sm:$0xf]
    %v1092 = vld [vmem:[%s364 + $0x4] sm:$0xf]
    %v1095 = vunpack.c.l.b16 %v1091
    %v1096 = vunpack.c.l.b16 %v1092
    %v1097 = vpack.c.b16 %v1096, %v1095
    %v1100 = vsel %vm92, %v1090, 0
    %1102 = vmatprep.subr.bf16.mxu0 0
    %1103 = vmatpush1.bf16.msra.mxu0 %v1097
    %1104 = vmatprep.subr.bf16.mxu0 0
    %1105 = vmatpush1.bf16.msra.mxu0 0
    %1106 = vmatprep.subr.bf16.mxu0 0
    %1107 = vmatpush1.bf16.msra.mxu0 0
    %1108 = vmatprep.subr.bf16.mxu0 0
    %1109 = vmatpush1.bf16.msra.mxu0 0
    %1110 = vmatprep.subr.bf16.mxu0 0
    %1111 = vmatpush1.bf16.msra.mxu0 0
    %1112 = vmatprep.subr.bf16.mxu0 0
    %1113 = vmatpush1.bf16.msra.mxu0 0
    %1114 = vmatprep.subr.bf16.mxu0 0
    %1115 = vmatpush1.bf16.msra.mxu0 0
    %1116 = vmatprep.subr.bf16.mxu0 0
    %1117 = vmatpush1.bf16.msra.mxu0 0
    %1118 = vmatprep.subr.bf16.mxu0 0
    %1119 = vmatpush1.bf16.msra.mxu0 0
    %1120 = vmatprep.subr.bf16.mxu0 0
    %1121 = vmatpush1.bf16.msra.mxu0 0
    %1122 = vmatprep.subr.bf16.mxu0 0
    %1123 = vmatpush1.bf16.msra.mxu0 0
    %1124 = vmatprep.subr.bf16.mxu0 0
    %1125 = vmatpush1.bf16.msra.mxu0 0
    %1126 = vmatprep.subr.bf16.mxu0 0
    %1127 = vmatpush1.bf16.msra.mxu0 0
    %1128 = vmatprep.subr.bf16.mxu0 0
    %1129 = vmatpush1.bf16.msra.mxu0 0
    %1130 = vmatprep.subr.bf16.mxu0 0
    %1131 = vmatpush1.bf16.msra.mxu0 0
    %1132 = vmatprep.subr.bf16.mxu0 0
    %1133 = vmatpush1.bf16.msra.mxu0 0
    %1134 = vmatprep.mubr.bf16.mxu0 0
    %1135 = vmatmul.mubr.bf16.gmra.mrb[0].mxu0 %v1100
    %v1136 = vpop.f32.mrb[0].mxu0
    %v1137 = vadd.f32 0.0, %v1136
    %v1138 = vpop.f32.mrb[0].mxu0
    %v1139 = vpop.f32.mrb[0].mxu0
    %v1140 = vpop.f32.mrb[0].mxu0
    %1141 = vdwg.mxu0
    %v1142 = vadd.f32 %v978, %v1137
    %1143 = vrot.lane.b32.xlu0 %v817, 96
    %v1144 = vpop.permute.xlu0 %1143
    %1145 = vrot.lane.b32.xlu0 %v817, 32
    %v1146 = vpop.permute.xlu0 %1145
    %v1148 = vsel %vm92, %v1144, 0
    %v1151 = vsel %vm92, %v1146, 0
    %1153 = vmatprep.subr.bf16.mxu0 0
    %1154 = vmatpush1.bf16.xpose.msra.mxu0 %v1151
    %1155 = vmatprep.subr.bf16.mxu0 0
    %1156 = vmatpush1.bf16.xpose.msra.mxu0 0
    %1157 = vmatprep.subr.bf16.mxu0 0
    %1158 = vmatpush1.bf16.xpose.msra.mxu0 0
    %1159 = vmatprep.subr.bf16.mxu0 0
    %1160 = vmatpush1.bf16.xpose.msra.mxu0 0
    %1161 = vmatprep.subr.bf16.mxu0 0
    %1162 = vmatpush1.bf16.xpose.msra.mxu0 0
    %1163 = vmatprep.subr.bf16.mxu0 0
    %1164 = vmatpush1.bf16.xpose.msra.mxu0 0
    %1165 = vmatprep.subr.bf16.mxu0 0
    %1166 = vmatpush1.bf16.xpose.msra.mxu0 0
    %1167 = vmatprep.subr.bf16.mxu0 0
    %1168 = vmatpush1.bf16.xpose.msra.mxu0 0
    %1169 = vmatprep.subr.bf16.mxu0 0
    %1170 = vmatpush1.bf16.xpose.msra.mxu0 0
    %1171 = vmatprep.subr.bf16.mxu0 0
    %1172 = vmatpush1.bf16.xpose.msra.mxu0 0
    %1173 = vmatprep.subr.bf16.mxu0 0
    %1174 = vmatpush1.bf16.xpose.msra.mxu0 0
    %1175 = vmatprep.subr.bf16.mxu0 0
    %1176 = vmatpush1.bf16.xpose.msra.mxu0 0
    %1177 = vmatprep.subr.bf16.mxu0 0
    %1178 = vmatpush1.bf16.xpose.msra.mxu0 0
    %1179 = vmatprep.subr.bf16.mxu0 0
    %1180 = vmatpush1.bf16.xpose.msra.mxu0 0
    %1181 = vmatprep.subr.bf16.mxu0 0
    %1182 = vmatpush1.bf16.xpose.msra.mxu0 0
    %1183 = vmatprep.subr.bf16.mxu0 0
    %1184 = vmatpush1.bf16.xpose.msra.mxu0 0
    %1185 = vmatprep.mubr.bf16.mxu0 0
    %1186 = vmatmul.mubr.bf16.gmra.mrb[0].mxu0 %v1148
    %v1187 = vpop.f32.mrb[0].mxu0
    %v1188 = vadd.f32 0.0, %v1187
    %v1189 = vpop.f32.mrb[0].mxu0
    %v1190 = vpop.f32.mrb[0].mxu0
    %v1191 = vpop.f32.mrb[0].mxu0
    %1192 = vdwg.mxu0
    %v1193 = vsel %vm139, %v1188, -inf
    %1194 = vmax.xlane.f32.xlu0 %v1193
    %v1195 = vpop.xlane.xlu0 %1194
    %v1196 = vsub.f32 %v1188, %v1195
    %v1197 = vmul.f32 %v1196, 1.442695
    %v1198 = vpow.pop %v1197
    %v1199 = vsel %vm139, %v1198, 0.0
    %1200 = vadd.xlane.f32.xlu0 %v1199
    %v1201 = vpop.xlane.xlu0 %1200
    %v1202 = vrcp.pop %v1201
    %v1203 = vmul.f32 %v1198, %v1202
    %v1204 = vpack.c.bf16 %v1203, %v1203
    %1205 = vrot.lane.b32.xlu0 %v818, 96
    %v1206 = vpop.permute.xlu0 %1205
    %v1208 = vsel %vm139, %v1204, 0
    %v1211 = vsel %vm155, %v1206, 0
    %1213 = vmatprep.subr.bf16.mxu0 0
    %1214 = vmatpush1.bf16.msra.mxu0 %v1211
    %1215 = vmatprep.subr.bf16.mxu0 0
    %1216 = vmatpush1.bf16.msra.mxu0 0
    %1217 = vmatprep.subr.bf16.mxu0 0
    %1218 = vmatpush1.bf16.msra.mxu0 0
    %1219 = vmatprep.subr.bf16.mxu0 0
    %1220 = vmatpush1.bf16.msra.mxu0 0
    %1221 = vmatprep.subr.bf16.mxu0 0
    %1222 = vmatpush1.bf16.msra.mxu0 0
    %1223 = vmatprep.subr.bf16.mxu0 0
    %1224 = vmatpush1.bf16.msra.mxu0 0
    %1225 = vmatprep.subr.bf16.mxu0 0
    %1226 = vmatpush1.bf16.msra.mxu0 0
    %1227 = vmatprep.subr.bf16.mxu0 0
    %1228 = vmatpush1.bf16.msra.mxu0 0
    %1229 = vmatprep.subr.bf16.mxu0 0
    %1230 = vmatpush1.bf16.msra.mxu0 0
    %1231 = vmatprep.subr.bf16.mxu0 0
    %1232 = vmatpush1.bf16.msra.mxu0 0
    %1233 = vmatprep.subr.bf16.mxu0 0
    %1234 = vmatpush1.bf16.msra.mxu0 0
    %1235 = vmatprep.subr.bf16.mxu0 0
    %1236 = vmatpush1.bf16.msra.mxu0 0
    %1237 = vmatprep.subr.bf16.mxu0 0
    %1238 = vmatpush1.bf16.msra.mxu0 0
    %1239 = vmatprep.subr.bf16.mxu0 0
    %1240 = vmatpush1.bf16.msra.mxu0 0
    %1241 = vmatprep.subr.bf16.mxu0 0
    %1242 = vmatpush1.bf16.msra.mxu0 0
    %1243 = vmatprep.subr.bf16.mxu0 0
    %1244 = vmatpush1.bf16.msra.mxu0 0
    %1245 = vmatprep.mubr.bf16.mxu0 0
    %1246 = vmatmul.mubr.bf16.gmra.mrb[0].mxu0 %v1208
    %v1247 = vpop.f32.mrb[0].mxu0
    %v1248 = vadd.f32 0.0, %v1247
    %v1249 = vpop.f32.mrb[0].mxu0
    %v1250 = vpop.f32.mrb[0].mxu0
    %v1251 = vpop.f32.mrb[0].mxu0
    %1252 = vdwg.mxu0
    %v1253 = vpack.c.bf16 %v1248, %v1248
    %v1254 = vld [vmem:[%s528] sm:$0xf]
    %v1255 = vld [vmem:[%s528 + $0x4] sm:$0xf]
    %v1258 = vunpack.c.l.b16 %v1254
    %v1259 = vunpack.c.l.b16 %v1255
    %v1260 = vpack.c.b16 %v1259, %v1258
    %v1263 = vsel %vm92, %v1253, 0
    %1265 = vmatprep.subr.bf16.mxu0 0
    %1266 = vmatpush1.bf16.msra.mxu0 %v1260
    %1267 = vmatprep.subr.bf16.mxu0 0
    %1268 = vmatpush1.bf16.msra.mxu0 0
    %1269 = vmatprep.subr.bf16.mxu0 0
    %1270 = vmatpush1.bf16.msra.mxu0 0
    %1271 = vmatprep.subr.bf16.mxu0 0
    %1272 = vmatpush1.bf16.msra.mxu0 0
    %1273 = vmatprep.subr.bf16.mxu0 0
    %1274 = vmatpush1.bf16.msra.mxu0 0
    %1275 = vmatprep.subr.bf16.mxu0 0
    %1276 = vmatpush1.bf16.msra.mxu0 0
    %1277 = vmatprep.subr.bf16.mxu0 0
    %1278 = vmatpush1.bf16.msra.mxu0 0
    %1279 = vmatprep.subr.bf16.mxu0 0
    %1280 = vmatpush1.bf16.msra.mxu0 0
    %1281 = vmatprep.subr.bf16.mxu0 0
    %1282 = vmatpush1.bf16.msra.mxu0 0
    %1283 = vmatprep.subr.bf16.mxu0 0
    %1284 = vmatpush1.bf16.msra.mxu0 0
    %1285 = vmatprep.subr.bf16.mxu0 0
    %1286 = vmatpush1.bf16.msra.mxu0 0
    %1287 = vmatprep.subr.bf16.mxu0 0
    %1288 = vmatpush1.bf16.msra.mxu0 0
    %1289 = vmatprep.subr.bf16.mxu0 0
    %1290 = vmatpush1.bf16.msra.mxu0 0
    %1291 = vmatprep.subr.bf16.mxu0 0
    %1292 = vmatpush1.bf16.msra.mxu0 0
    %1293 = vmatprep.subr.bf16.mxu0 0
    %1294 = vmatpush1.bf16.msra.mxu0 0
    %1295 = vmatprep.subr.bf16.mxu0 0
    %1296 = vmatpush1.bf16.msra.mxu0 0
    %1297 = vmatprep.mubr.bf16.mxu0 0
    %1298 = vmatmul.mubr.bf16.gmra.mrb[0].mxu0 %v1263
    %v1299 = vpop.f32.mrb[0].mxu0
    %v1300 = vadd.f32 0.0, %v1299
    %v1301 = vpop.f32.mrb[0].mxu0
    %v1302 = vpop.f32.mrb[0].mxu0
    %v1303 = vpop.f32.mrb[0].mxu0
    %1304 = vdwg.mxu0
    %v1305 = vadd.f32 %v1142, %v1300
    %1306 = vrot.lane.b32.xlu0 %v817, 80
    %v1307 = vpop.permute.xlu0 %1306
    %1308 = vrot.lane.b32.xlu0 %v817, 16
    %v1309 = vpop.permute.xlu0 %1308
    %v1311 = vsel %vm92, %v1307, 0
    %v1314 = vsel %vm92, %v1309, 0
    %1316 = vmatprep.subr.bf16.mxu0 0
    %1317 = vmatpush1.bf16.xpose.msra.mxu0 %v1314
    %1318 = vmatprep.subr.bf16.mxu0 0
    %1319 = vmatpush1.bf16.xpose.msra.mxu0 0
    %1320 = vmatprep.subr.bf16.mxu0 0
    %1321 = vmatpush1.bf16.xpose.msra.mxu0 0
    %1322 = vmatprep.subr.bf16.mxu0 0
    %1323 = vmatpush1.bf16.xpose.msra.mxu0 0
    %1324 = vmatprep.subr.bf16.mxu0 0
    %1325 = vmatpush1.bf16.xpose.msra.mxu0 0
    %1326 = vmatprep.subr.bf16.mxu0 0
    %1327 = vmatpush1.bf16.xpose.msra.mxu0 0
    %1328 = vmatprep.subr.bf16.mxu0 0
    %1329 = vmatpush1.bf16.xpose.msra.mxu0 0
    %1330 = vmatprep.subr.bf16.mxu0 0
    %1331 = vmatpush1.bf16.xpose.msra.mxu0 0
    %1332 = vmatprep.subr.bf16.mxu0 0
    %1333 = vmatpush1.bf16.xpose.msra.mxu0 0
    %1334 = vmatprep.subr.bf16.mxu0 0
    %1335 = vmatpush1.bf16.xpose.msra.mxu0 0
    %1336 = vmatprep.subr.bf16.mxu0 0
    %1337 = vmatpush1.bf16.xpose.msra.mxu0 0
    %1338 = vmatprep.subr.bf16.mxu0 0
    %1339 = vmatpush1.bf16.xpose.msra.mxu0 0
    %1340 = vmatprep.subr.bf16.mxu0 0
    %1341 = vmatpush1.bf16.xpose.msra.mxu0 0
    %1342 = vmatprep.subr.bf16.mxu0 0
    %1343 = vmatpush1.bf16.xpose.msra.mxu0 0
    %1344 = vmatprep.subr.bf16.mxu0 0
    %1345 = vmatpush1.bf16.xpose.msra.mxu0 0
    %1346 = vmatprep.subr.bf16.mxu0 0
    %1347 = vmatpush1.bf16.xpose.msra.mxu0 0
    %1348 = vmatprep.mubr.bf16.mxu0 0
    %1349 = vmatmul.mubr.bf16.gmra.mrb[0].mxu0 %v1311
    %v1350 = vpop.f32.mrb[0].mxu0
    %v1351 = vadd.f32 0.0, %v1350
    %v1352 = vpop.f32.mrb[0].mxu0
    %v1353 = vpop.f32.mrb[0].mxu0
    %v1354 = vpop.f32.mrb[0].mxu0
    %1355 = vdwg.mxu0
    %v1356 = vsel %vm139, %v1351, -inf
    %1357 = vmax.xlane.f32.xlu0 %v1356
    %v1358 = vpop.xlane.xlu0 %1357
    %v1359 = vsub.f32 %v1351, %v1358
    %v1360 = vmul.f32 %v1359, 1.442695
    %v1361 = vpow.pop %v1360
    %v1362 = vsel %vm139, %v1361, 0.0
    %1363 = vadd.xlane.f32.xlu0 %v1362
    %v1364 = vpop.xlane.xlu0 %1363
    %v1365 = vrcp.pop %v1364
    %v1366 = vmul.f32 %v1361, %v1365
    %v1367 = vpack.c.bf16 %v1366, %v1366
    %1368 = vrot.lane.b32.xlu0 %v818, 80
    %v1369 = vpop.permute.xlu0 %1368
    %v1371 = vsel %vm139, %v1367, 0
    %v1374 = vsel %vm155, %v1369, 0
    %1376 = vmatprep.subr.bf16.mxu0 0
    %1377 = vmatpush1.bf16.msra.mxu0 %v1374
    %1378 = vmatprep.subr.bf16.mxu0 0
    %1379 = vmatpush1.bf16.msra.mxu0 0
    %1380 = vmatprep.subr.bf16.mxu0 0
    %1381 = vmatpush1.bf16.msra.mxu0 0
    %1382 = vmatprep.subr.bf16.mxu0 0
    %1383 = vmatpush1.bf16.msra.mxu0 0
    %1384 = vmatprep.subr.bf16.mxu0 0
    %1385 = vmatpush1.bf16.msra.mxu0 0
    %1386 = vmatprep.subr.bf16.mxu0 0
    %1387 = vmatpush1.bf16.msra.mxu0 0
    %1388 = vmatprep.subr.bf16.mxu0 0
    %1389 = vmatpush1.bf16.msra.mxu0 0
    %1390 = vmatprep.subr.bf16.mxu0 0
    %1391 = vmatpush1.bf16.msra.mxu0 0
    %1392 = vmatprep.subr.bf16.mxu0 0
    %1393 = vmatpush1.bf16.msra.mxu0 0
    %1394 = vmatprep.subr.bf16.mxu0 0
    %1395 = vmatpush1.bf16.msra.mxu0 0
    %1396 = vmatprep.subr.bf16.mxu0 0
    %1397 = vmatpush1.bf16.msra.mxu0 0
    %1398 = vmatprep.subr.bf16.mxu0 0
    %1399 = vmatpush1.bf16.msra.mxu0 0
    %1400 = vmatprep.subr.bf16.mxu0 0
    %1401 = vmatpush1.bf16.msra.mxu0 0
    %1402 = vmatprep.subr.bf16.mxu0 0
    %1403 = vmatpush1.bf16.msra.mxu0 0
    %1404 = vmatprep.subr.bf16.mxu0 0
    %1405 = vmatpush1.bf16.msra.mxu0 0
    %1406 = vmatprep.subr.bf16.mxu0 0
    %1407 = vmatpush1.bf16.msra.mxu0 0
    %1408 = vmatprep.mubr.bf16.mxu0 0
    %1409 = vmatmul.mubr.bf16.gmra.mrb[0].mxu0 %v1371
    %v1410 = vpop.f32.mrb[0].mxu0
    %v1411 = vadd.f32 0.0, %v1410
    %v1412 = vpop.f32.mrb[0].mxu0
    %v1413 = vpop.f32.mrb[0].mxu0
    %v1414 = vpop.f32.mrb[0].mxu0
    %1415 = vdwg.mxu0
    %v1416 = vpack.c.bf16 %v1411, %v1411
    %v1417 = vld [vmem:[%s692] sm:$0xf]
    %v1418 = vld [vmem:[%s692 + $0x4] sm:$0xf]
    %v1421 = vunpack.c.l.b16 %v1417
    %v1422 = vunpack.c.l.b16 %v1418
    %v1423 = vpack.c.b16 %v1422, %v1421
    %v1426 = vsel %vm92, %v1416, 0
    %1428 = vmatprep.subr.bf16.mxu0 0
    %1429 = vmatpush1.bf16.msra.mxu0 %v1423
    %1430 = vmatprep.subr.bf16.mxu0 0
    %1431 = vmatpush1.bf16.msra.mxu0 0
    %1432 = vmatprep.subr.bf16.mxu0 0
    %1433 = vmatpush1.bf16.msra.mxu0 0
    %1434 = vmatprep.subr.bf16.mxu0 0
    %1435 = vmatpush1.bf16.msra.mxu0 0
    %1436 = vmatprep.subr.bf16.mxu0 0
    %1437 = vmatpush1.bf16.msra.mxu0 0
    %1438 = vmatprep.subr.bf16.mxu0 0
    %1439 = vmatpush1.bf16.msra.mxu0 0
    %1440 = vmatprep.subr.bf16.mxu0 0
    %1441 = vmatpush1.bf16.msra.mxu0 0
    %1442 = vmatprep.subr.bf16.mxu0 0
    %1443 = vmatpush1.bf16.msra.mxu0 0
    %1444 = vmatprep.subr.bf16.mxu0 0
    %1445 = vmatpush1.bf16.msra.mxu0 0
    %1446 = vmatprep.subr.bf16.mxu0 0
    %1447 = vmatpush1.bf16.msra.mxu0 0
    %1448 = vmatprep.subr.bf16.mxu0 0
    %1449 = vmatpush1.bf16.msra.mxu0 0
    %1450 = vmatprep.subr.bf16.mxu0 0
    %1451 = vmatpush1.bf16.msra.mxu0 0
    %1452 = vmatprep.subr.bf16.mxu0 0
    %1453 = vmatpush1.bf16.msra.mxu0 0
    %1454 = vmatprep.subr.bf16.mxu0 0
    %1455 = vmatpush1.bf16.msra.mxu0 0
    %1456 = vmatprep.subr.bf16.mxu0 0
    %1457 = vmatpush1.bf16.msra.mxu0 0
    %1458 = vmatprep.subr.bf16.mxu0 0
    %1459 = vmatpush1.bf16.msra.mxu0 0
    %1460 = vmatprep.mubr.bf16.mxu0 0
    %1461 = vmatmul.mubr.bf16.gmra.mrb[0].mxu0 %v1426
    %v1462 = vpop.f32.mrb[0].mxu0
    %v1463 = vadd.f32 0.0, %v1462
    %v1464 = vpop.f32.mrb[0].mxu0
    %v1465 = vpop.f32.mrb[0].mxu0
    %v1466 = vpop.f32.mrb[0].mxu0
    %1467 = vdwg.mxu0
    %v1468 = vadd.f32 %v1305, %v1463
    %s1469 = scalar_lea.vmem [#allocation2], 8
    %1470 = vst.msk [vmem:[%s1469] sm:$0xff] %vm42, %v1468
    // Predicated region
    $region14: #{fwd.1} parent=1 // pred_check
      _
    $region15: #{fwd.1} parent=1 // pred_check_branch
      %1472 = sbr.rel (0) target = $region17
    $region16: #{fwd.1} parent=1 // pred_region
      %s1474 = ssub.s32 256, 256
      %1475 = vsyncadd [#allocation3], %s1474
      %s1476 = sshll.u32 [#allocation2], 4
      %s1477 = int_to_ptr.vmem [resolvable:$true] %s1476
      %1482 = dma.vmem_to_hbm [thread:$0]  %s1477, 256, %s3, [#allocation3], 128, 128, 8
    $region17: #{fwd.1} parent=1 // pred_fallthru
      _
    // Predicated region
    $region18: #{fwd.1} parent=1 // pred_check
      _
    $region19: #{fwd.1} parent=1 // pred_check_branch
      %1484 = sbr.rel (0) target = $region21
    $region20: #{fwd.1} parent=1 // pred_region
      %1485 = dma.done [#allocation3], 256
    $region21: #{fwd.1} parent=1 // pred_fallthru
      _
    %1486 = vsyncpa [#allocation3], 1

</llo_original>
